<compile_context>
chip_gen: v7x
topology: tpu7x:2x2x1
jax: 0.10.0
libtpu: 0.0.40
codegen_flags: <defaults>
</compile_context>

<pallas_src>
import jax
import jax.numpy as jnp
from jax.experimental import pallas as pl
from jax.experimental.pallas import tpu as pltpu


HIDDEN = 256
TB_MAX = 1024   # max batch tile (lanes); keeps live VMEM per step at a few MiB


def _round_up(x, m):
    return ((x + m - 1) // m) * m


def _sac_critic_kernel(state_ref, action_ref,
                       w1_ref, b1_ref,
                       w2q1_ref, b2q1_ref, w2q2_ref, b2q2_ref,
                       w3a_ref, w3b_ref, b3_ref,
                       out_ref):
    """One batch tile (feature-major): both Q heads -> lane-dense (2, tb) output."""
    # In-VMEM concat -> (S+A, tb); HBM never sees the concatenated `sa`.
    sa = jnp.concatenate([state_ref[...], action_ref[...]], axis=0).astype(jnp.bfloat16)

    # Fused layer 1 for both heads: (512, tb) = [h1_q1 ; h1_q2].
    h1 = jnp.dot(w1_ref[...], sa, preferred_element_type=jnp.float32) + b1_ref[...]
    h1 = jnp.maximum(h1, 0.0).astype(jnp.bfloat16)
    h1_q1 = h1[:HIDDEN]
    h1_q2 = h1[HIDDEN:]

    # Layer 2, per head (two dense 256x256 dots; no block-diagonal FLOP doubling).
    h2_q1 = jnp.dot(w2q1_ref[...], h1_q1, preferred_element_type=jnp.float32) + b2q1_ref[...]
    h2_q1 = jnp.maximum(h2_q1, 0.0).astype(jnp.bfloat16)
    h2_q2 = jnp.dot(w2q2_ref[...], h1_q2, preferred_element_type=jnp.float32) + b2q2_ref[...]
    h2_q2 = jnp.maximum(h2_q2, 0.0).astype(jnp.bfloat16)

    # Layer 3: (2, 256) block weights put q1 in row 0 and q2 in row 1 of one
    # lane-dense (2, tb) store — no zero-padded output lanes.
    out_ref[...] = (jnp.dot(w3a_ref[...], h2_q1, preferred_element_type=jnp.float32)
                    + jnp.dot(w3b_ref[...], h2_q2, preferred_element_type=jnp.float32)
                    + b3_ref[...])


def prepare_params(params):
    """One-time weight preprocessing: transpose to feature-major, fuse both heads'
    first layers, build the (2, 256) layer-3 block weights, cast matmul operands
    to bf16 (biases stay f32)."""
    (w1_1, b1_1, w2_1, b2_1, w3_1, b3_1) = params["q1"]
    (w1_2, b1_2, w2_2, b2_2, w3_2, b3_2) = params["q2"]

    w1 = jnp.concatenate([w1_1.T, w1_2.T], axis=0).astype(jnp.bfloat16)   # (512, S+A)
    b1 = jnp.concatenate([b1_1, b1_2]).reshape(2 * HIDDEN, 1).astype(jnp.float32)

    w2q1 = w2_1.T.astype(jnp.bfloat16)                                    # (256, 256)
    w2q2 = w2_2.T.astype(jnp.bfloat16)
    b2q1 = b2_1.reshape(HIDDEN, 1).astype(jnp.float32)
    b2q2 = b2_2.reshape(HIDDEN, 1).astype(jnp.float32)

    w3a = jnp.zeros((2, HIDDEN), jnp.float32).at[0].set(w3_1[:, 0]).astype(jnp.bfloat16)
    w3b = jnp.zeros((2, HIDDEN), jnp.float32).at[1].set(w3_2[:, 0]).astype(jnp.bfloat16)
    b3 = jnp.array([[b3_1[0]], [b3_2[0]]], jnp.float32)                   # (2, 1)

    return (w1, b1, w2q1, b2q1, w2q2, b2q2, w3a, w3b, b3)


@jax.jit
def sac_critic_forward(state, action, prepared):
    state = state.astype(jnp.float32)
    action = action.astype(jnp.float32)
    B, S = state.shape
    A = action.shape[1]

    # Batch tile (lanes): multiple of 128, capped at TB_MAX, and >= 2 grid steps
    # once the padded batch exceeds one tile so both v7x TensorCores get work.
    Bp0 = _round_up(B, 128)
    if Bp0 <= 128:
        tb = Bp0
    else:
        tb = min(TB_MAX, _round_up((Bp0 + 1) // 2, 128))
    Bp = _round_up(B, tb)

    # Feature-major inputs: batch along lanes -> lane-dense input tiles.
    state_t = jnp.pad(state, ((0, Bp - B), (0, 0))).T      # (S, Bp)
    action_t = jnp.pad(action, ((0, Bp - B), (0, 0))).T    # (A, Bp)

    grid = (Bp // tb,)
    in_specs = [
        pl.BlockSpec((S, tb), lambda i: (0, i)),
        pl.BlockSpec((A, tb), lambda i: (0, i)),
    ] + [pl.BlockSpec(p.shape, lambda i: (0, 0)) for p in prepared]  # resident weights

    out = pl.pallas_call(
        _sac_critic_kernel,
        out_shape=jax.ShapeDtypeStruct((2, Bp), jnp.float32),
        grid=grid,
        in_specs=in_specs,
        out_specs=pl.BlockSpec((2, tb), lambda i: (0, i)),
        compiler_params=pltpu.CompilerParams(
            dimension_semantics=("parallel",)),
    )(state_t, action_t, *prepared)

    q1 = out[0, :B][:, None]
    q2 = out[1, :B][:, None]
    return q1, q2


def init_params(key, state_dim, action_dim, hidden_dim=HIDDEN):
    """PyTorch-default-style uniform(-1/sqrt(fan_in), 1/sqrt(fan_in)) init."""
    d_in = state_dim + action_dim

    def linear(key, fan_in, fan_out):
        kw, kb = jax.random.split(key)
        bound = 1.0 / jnp.sqrt(float(fan_in))
        w = jax.random.uniform(kw, (fan_in, fan_out), jnp.float32, -bound, bound)
        b = jax.random.uniform(kb, (fan_out,), jnp.float32, -bound, bound)
        return w, b

    keys = jax.random.split(key, 6)

    def head(k1, k2, k3):
        w1, b1 = linear(k1, d_in, hidden_dim)
        w2, b2 = linear(k2, hidden_dim, hidden_dim)
        w3, b3 = linear(k3, hidden_dim, 1)
        return (w1, b1, w2, b2, w3, b3)

    return {"q1": head(keys[0], keys[1], keys[2]),
            "q2": head(keys[3], keys[4], keys[5])}


def _reference_forward(state, action, params):
    """Pure-JAX reference with the same bf16-operand / f32-accumulate arithmetic."""
    sa = jnp.concatenate([state, action], axis=1)

    def mm(x, w):
        return jnp.dot(x.astype(jnp.bfloat16), w.astype(jnp.bfloat16),
                       preferred_element_type=jnp.float32)

    def q_head(p):
        w1, b1, w2, b2, w3, b3 = p
        h = jax.nn.relu(mm(sa, w1) + b1)
        h = jax.nn.relu(mm(h, w2) + b2)
        return mm(h, w3) + b3

    return q_head(params["q1"]), q_head(params["q2"])


if __name__ == "__main__":
    key = jax.random.PRNGKey(0)
    k_params, k_state, k_action = jax.random.split(key, 3)

    batch, state_dim, action_dim = 8, 16, 8
    params = init_params(k_params, state_dim, action_dim)
    prepared = prepare_params(params)

    state = jax.random.normal(k_state, (batch, state_dim), jnp.float32)
    action = jax.random.normal(k_action, (batch, action_dim), jnp.float32)

    q1, q2 = sac_critic_forward(state, action, prepared)
    jax.block_until_ready((q1, q2))

    q1_ref, q2_ref = _reference_forward(state, action, params)
    assert q1.shape == (batch, 1) and q2.shape == (batch, 1)
    # Note: matmul operands are bf16 (MXU-native); matches the bf16 reference,
    # ~1e-2-level relative error vs a pure-f32 PyTorch SACCritic is expected.
    assert jnp.allclose(q1, q1_ref, atol=1e-3, rtol=1e-3), float(jnp.max(jnp.abs(q1 - q1_ref)))
    assert jnp.allclose(q2, q2_ref, atol=1e-3, rtol=1e-3), float(jnp.max(jnp.abs(q2 - q2_ref)))

    print("KERNEL_OK")
</pallas_src>

<mosaic_0001>
module attributes {stable_mosaic.version = 11 : i64} {
  func.func @_sac_critic_kernel(%arg0: i32, %arg1: memref<16x128xf32, #tpu.memory_space<vmem>>, %arg2: memref<8x128xf32, #tpu.memory_space<vmem>>, %arg3: memref<512x24xbf16, #tpu.memory_space<vmem>>, %arg4: memref<512x1xf32, #tpu.memory_space<vmem>>, %arg5: memref<256x256xbf16, #tpu.memory_space<vmem>>, %arg6: memref<256x1xf32, #tpu.memory_space<vmem>>, %arg7: memref<256x256xbf16, #tpu.memory_space<vmem>>, %arg8: memref<256x1xf32, #tpu.memory_space<vmem>>, %arg9: memref<2x256xbf16, #tpu.memory_space<vmem>>, %arg10: memref<2x256xbf16, #tpu.memory_space<vmem>>, %arg11: memref<2x1xf32, #tpu.memory_space<vmem>>, %arg12: memref<2x128xf32, #tpu.memory_space<vmem>>) attributes {dimension_semantics = [#tpu.dimension_semantics<parallel>], iteration_bounds = array<i64: 1>, scalar_prefetch = 0 : i64, scratch_operands = 0 : i64, tpu.core_type = #tpu.core_type<tc>, window_params = [{transform_indices = @transform_0, window_bounds = array<i64: 16, 128>}, {transform_indices = @transform_1, window_bounds = array<i64: 8, 128>}, {pipeline_mode = #tpu.pipeline_mode<synchronous>, transform_indices = @transform_2, window_bounds = array<i64: 512, 24>}, {pipeline_mode = #tpu.pipeline_mode<synchronous>, transform_indices = @transform_3, window_bounds = array<i64: 512, 1>}, {pipeline_mode = #tpu.pipeline_mode<synchronous>, transform_indices = @transform_4, window_bounds = array<i64: 256, 256>}, {pipeline_mode = #tpu.pipeline_mode<synchronous>, transform_indices = @transform_5, window_bounds = array<i64: 256, 1>}, {pipeline_mode = #tpu.pipeline_mode<synchronous>, transform_indices = @transform_6, window_bounds = array<i64: 256, 256>}, {pipeline_mode = #tpu.pipeline_mode<synchronous>, transform_indices = @transform_7, window_bounds = array<i64: 256, 1>}, {pipeline_mode = #tpu.pipeline_mode<synchronous>, transform_indices = @transform_8, window_bounds = array<i64: 2, 256>}, {pipeline_mode = #tpu.pipeline_mode<synchronous>, transform_indices = @transform_9, window_bounds = array<i64: 2, 256>}, {pipeline_mode = #tpu.pipeline_mode<synchronous>, transform_indices = @transform_10, window_bounds = array<i64: 2, 1>}, {transform_indices = @transform_11, window_bounds = array<i64: 2, 128>}]} {
    %c0 = arith.constant 0 : index
    %c0_0 = arith.constant 0 : index
    %0 = vector.load %arg1[%c0, %c0_0] : memref<16x128xf32, #tpu.memory_space<vmem>>, vector<16x128xf32>
    %c0_1 = arith.constant 0 : index
    %c0_2 = arith.constant 0 : index
    %1 = vector.load %arg2[%c0_1, %c0_2] : memref<8x128xf32, #tpu.memory_space<vmem>>, vector<8x128xf32>
    %2 = tpu.concatenate %0, %1 in 0 : vector<16x128xf32>, vector<8x128xf32> -> vector<24x128xf32>
    %3 = arith.truncf %2 : vector<24x128xf32> to vector<24x128xbf16>
    %c0_3 = arith.constant 0 : index
    %c0_4 = arith.constant 0 : index
    %4 = vector.load %arg3[%c0_3, %c0_4] : memref<512x24xbf16, #tpu.memory_space<vmem>>, vector<512x24xbf16>
    %cst = arith.constant dense<0.000000e+00> : vector<512x128xf32>
    %5 = tpu.matmul %4, %3, %cst {dimension_numbers = #tpu.dot_dimension_numbers<[1], [0], [0], [1], [0, 0, 1, 1], [], []>} : vector<512x24xbf16>, vector<24x128xbf16>, vector<512x128xf32> -> vector<512x128xf32>
    %c0_5 = arith.constant 0 : index
    %c0_6 = arith.constant 0 : index
    %6 = vector.load %arg4[%c0_5, %c0_6] : memref<512x1xf32, #tpu.memory_space<vmem>>, vector<512x1xf32>
    %7 = vector.broadcast %6 : vector<512x1xf32> to vector<512x128xf32>
    %8 = arith.addf %5, %7 : vector<512x128xf32>
    %cst_7 = arith.constant 0.000000e+00 : f32
    %9 = vector.broadcast %cst_7 : f32 to vector<512x128xf32>
    %10 = arith.maximumf %8, %9 : vector<512x128xf32>
    %11 = arith.truncf %10 : vector<512x128xf32> to vector<512x128xbf16>
    %12 = vector.extract_strided_slice %11 {offsets = [0, 0], sizes = [256, 128], strides = [1, 1]} : vector<512x128xbf16> to vector<256x128xbf16>
    %13 = vector.extract_strided_slice %11 {offsets = [256, 0], sizes = [256, 128], strides = [1, 1]} : vector<512x128xbf16> to vector<256x128xbf16>
    %c0_8 = arith.constant 0 : index
    %c0_9 = arith.constant 0 : index
    %14 = vector.load %arg5[%c0_8, %c0_9] : memref<256x256xbf16, #tpu.memory_space<vmem>>, vector<256x256xbf16>
    %cst_10 = arith.constant dense<0.000000e+00> : vector<256x128xf32>
    %15 = tpu.matmul %14, %12, %cst_10 {dimension_numbers = #tpu.dot_dimension_numbers<[1], [0], [0], [1], [0, 0, 1, 1], [], []>} : vector<256x256xbf16>, vector<256x128xbf16>, vector<256x128xf32> -> vector<256x128xf32>
    %c0_11 = arith.constant 0 : index
    %c0_12 = arith.constant 0 : index
    %16 = vector.load %arg6[%c0_11, %c0_12] : memref<256x1xf32, #tpu.memory_space<vmem>>, vector<256x1xf32>
    %17 = vector.broadcast %16 : vector<256x1xf32> to vector<256x128xf32>
    %18 = arith.addf %15, %17 : vector<256x128xf32>
    %cst_13 = arith.constant 0.000000e+00 : f32
    %19 = vector.broadcast %cst_13 : f32 to vector<256x128xf32>
    %20 = arith.maximumf %18, %19 : vector<256x128xf32>
    %21 = arith.truncf %20 : vector<256x128xf32> to vector<256x128xbf16>
    %c0_14 = arith.constant 0 : index
    %c0_15 = arith.constant 0 : index
    %22 = vector.load %arg7[%c0_14, %c0_15] : memref<256x256xbf16, #tpu.memory_space<vmem>>, vector<256x256xbf16>
    %cst_16 = arith.constant dense<0.000000e+00> : vector<256x128xf32>
    %23 = tpu.matmul %22, %13, %cst_16 {dimension_numbers = #tpu.dot_dimension_numbers<[1], [0], [0], [1], [0, 0, 1, 1], [], []>} : vector<256x256xbf16>, vector<256x128xbf16>, vector<256x128xf32> -> vector<256x128xf32>
    %c0_17 = arith.constant 0 : index
    %c0_18 = arith.constant 0 : index
    %24 = vector.load %arg8[%c0_17, %c0_18] : memref<256x1xf32, #tpu.memory_space<vmem>>, vector<256x1xf32>
    %25 = vector.broadcast %24 : vector<256x1xf32> to vector<256x128xf32>
    %26 = arith.addf %23, %25 : vector<256x128xf32>
    %cst_19 = arith.constant 0.000000e+00 : f32
    %27 = vector.broadcast %cst_19 : f32 to vector<256x128xf32>
    %28 = arith.maximumf %26, %27 : vector<256x128xf32>
    %29 = arith.truncf %28 : vector<256x128xf32> to vector<256x128xbf16>
    %c0_20 = arith.constant 0 : index
    %c0_21 = arith.constant 0 : index
    %30 = vector.load %arg9[%c0_20, %c0_21] : memref<2x256xbf16, #tpu.memory_space<vmem>>, vector<2x256xbf16>
    %cst_22 = arith.constant dense<0.000000e+00> : vector<2x128xf32>
    %31 = tpu.matmul %30, %21, %cst_22 {dimension_numbers = #tpu.dot_dimension_numbers<[1], [0], [0], [1], [0, 0, 1, 1], [], []>} : vector<2x256xbf16>, vector<256x128xbf16>, vector<2x128xf32> -> vector<2x128xf32>
    %c0_23 = arith.constant 0 : index
    %c0_24 = arith.constant 0 : index
    %32 = vector.load %arg10[%c0_23, %c0_24] : memref<2x256xbf16, #tpu.memory_space<vmem>>, vector<2x256xbf16>
    %cst_25 = arith.constant dense<0.000000e+00> : vector<2x128xf32>
    %33 = tpu.matmul %32, %29, %cst_25 {dimension_numbers = #tpu.dot_dimension_numbers<[1], [0], [0], [1], [0, 0, 1, 1], [], []>} : vector<2x256xbf16>, vector<256x128xbf16>, vector<2x128xf32> -> vector<2x128xf32>
    %34 = arith.addf %31, %33 : vector<2x128xf32>
    %c0_26 = arith.constant 0 : index
    %c0_27 = arith.constant 0 : index
    %35 = vector.load %arg11[%c0_26, %c0_27] : memref<2x1xf32, #tpu.memory_space<vmem>>, vector<2x1xf32>
    %36 = vector.broadcast %35 : vector<2x1xf32> to vector<2x128xf32>
    %37 = arith.addf %34, %36 : vector<2x128xf32>
    %c0_28 = arith.constant 0 : index
    %c0_29 = arith.constant 0 : index
    %38 = vector.load %arg12[%c0_28, %c0_29] : memref<2x128xf32, #tpu.memory_space<vmem>>, vector<2x128xf32>
    tpu.vector_store %arg12[%c0_28, %c0_29], %37 {strides = array<i32>} : memref<2x128xf32, #tpu.memory_space<vmem>>, vector<2x128xf32>,
    return
  }
  func.func @transform_0(%arg0: i32) -> (i32, i32) {
    %c0_i32 = arith.constant 0 : i32
    %c0_i32_0 = arith.constant 0 : i32
    return %c0_i32, %arg0 : i32, i32
  }
  func.func @transform_1(%arg0: i32) -> (i32, i32) {
    %c0_i32 = arith.constant 0 : i32
    %c0_i32_0 = arith.constant 0 : i32
    return %c0_i32, %arg0 : i32, i32
  }
  func.func @transform_2(%arg0: i32) -> (i32, i32) {
    %c0_i32 = arith.constant 0 : i32
    %c0_i32_0 = arith.constant 0 : i32
    %c0_i32_1 = arith.constant 0 : i32
    return %c0_i32, %c0_i32_0 : i32, i32
  }
  func.func @transform_3(%arg0: i32) -> (i32, i32) {
    %c0_i32 = arith.constant 0 : i32
    %c0_i32_0 = arith.constant 0 : i32
    %c0_i32_1 = arith.constant 0 : i32
    return %c0_i32, %c0_i32_0 : i32, i32
  }
  func.func @transform_4(%arg0: i32) -> (i32, i32) {
    %c0_i32 = arith.constant 0 : i32
    %c0_i32_0 = arith.constant 0 : i32
    %c0_i32_1 = arith.constant 0 : i32
    return %c0_i32, %c0_i32_0 : i32, i32
  }
  func.func @transform_5(%arg0: i32) -> (i32, i32) {
    %c0_i32 = arith.constant 0 : i32
    %c0_i32_0 = arith.constant 0 : i32
    %c0_i32_1 = arith.constant 0 : i32
    return %c0_i32, %c0_i32_0 : i32, i32
  }
  func.func @transform_6(%arg0: i32) -> (i32, i32) {
    %c0_i32 = arith.constant 0 : i32
    %c0_i32_0 = arith.constant 0 : i32
    %c0_i32_1 = arith.constant 0 : i32
    return %c0_i32, %c0_i32_0 : i32, i32
  }
  func.func @transform_7(%arg0: i32) -> (i32, i32) {
    %c0_i32 = arith.constant 0 : i32
    %c0_i32_0 = arith.constant 0 : i32
    %c0_i32_1 = arith.constant 0 : i32
    return %c0_i32, %c0_i32_0 : i32, i32
  }
  func.func @transform_8(%arg0: i32) -> (i32, i32) {
    %c0_i32 = arith.constant 0 : i32
    %c0_i32_0 = arith.constant 0 : i32
    %c0_i32_1 = arith.constant 0 : i32
    return %c0_i32, %c0_i32_0 : i32, i32
  }
  func.func @transform_9(%arg0: i32) -> (i32, i32) {
    %c0_i32 = arith.constant 0 : i32
    %c0_i32_0 = arith.constant 0 : i32
    %c0_i32_1 = arith.constant 0 : i32
    return %c0_i32, %c0_i32_0 : i32, i32
  }
  func.func @transform_10(%arg0: i32) -> (i32, i32) {
    %c0_i32 = arith.constant 0 : i32
    %c0_i32_0 = arith.constant 0 : i32
    %c0_i32_1 = arith.constant 0 : i32
    return %c0_i32, %c0_i32_0 : i32, i32
  }
  func.func @transform_11(%arg0: i32) -> (i32, i32) {
    %c0_i32 = arith.constant 0 : i32
    %c0_i32_0 = arith.constant 0 : i32
    return %c0_i32, %arg0 : i32, i32
  }
}

</mosaic_0001>

<llo_original>
// kernel: sac_critic_forward.1
$region0: #{sac_critic_forward.1}
  #allocation0 [shape = 'u32[]', space=smem, size = 0x4, offset = 0x4, fixed_abs, tag = 'smem constant byte address 0x4 - core index']
  #allocation1 [shape = 'u32[144,128]{1,0:T(1,128)}', space=vmem, size = 0x12000, scoped, tag = 'internal scratch']
  %s0 = inlined_call_operand.vmem [shape: f32[16,128], index: 0, kind: input, shape index: {}]
  %s1 = inlined_call_operand.vmem [shape: f32[8,128], index: 1, kind: input, shape index: {}]
  %s2 = inlined_call_operand.vmem [shape: bf16[512,24], index: 2, kind: input, shape index: {}]
  %s3 = inlined_call_operand.vmem [shape: f32[512,1], index: 3, kind: input, shape index: {}]
  %s4 = inlined_call_operand.vmem [shape: bf16[256,256], index: 4, kind: input, shape index: {}]
  %s5 = inlined_call_operand.vmem [shape: f32[256,1], index: 5, kind: input, shape index: {}]
  %s6 = inlined_call_operand.vmem [shape: bf16[256,256], index: 6, kind: input, shape index: {}]
  %s7 = inlined_call_operand.vmem [shape: f32[256,1], index: 7, kind: input, shape index: {}]
  %s8 = inlined_call_operand.vmem [shape: bf16[2,256], index: 8, kind: input, shape index: {}]
  %s9 = inlined_call_operand.vmem [shape: bf16[2,256], index: 9, kind: input, shape index: {}]
  %s10 = inlined_call_operand.vmem [shape: f32[2,1], index: 10, kind: input, shape index: {}]
  %s11 = inlined_call_operand.vmem [shape: f32[2,128], index: 11, kind: output, shape index: {}]
  %s12 = sld [smem:[#allocation0]]
  $region54: #{sac_critic_forward.1} parent=0
    _
  %s14 = ssub.s32 1, %s12
  %s15 = scalar_select 0, %s14, %s12
  // Predicated region
  $region2: #{sac_critic_forward.1} parent=0 // pred_check
    _
  $region3: #{sac_critic_forward.1} parent=0 // pred_check_branch
    %17 = sbr.rel (0) target = $region5
  $region4: #{sac_critic_forward.1} parent=0 // pred_region
    _
  $region5: #{sac_critic_forward.1} parent=0 // pred_fallthru
    _
  // Predicated region
  $region6: #{sac_critic_forward.1} parent=0 // pred_check
    _
  $region7: #{sac_critic_forward.1} parent=0 // pred_check_branch
    %19 = sbr.rel (0) target = $region9
  $region8: #{sac_critic_forward.1} parent=0 // pred_region
    _
  $region9: #{sac_critic_forward.1} parent=0 // pred_fallthru
    _
  // Predicated region
  $region10: #{sac_critic_forward.1} parent=0 // pred_check
    _
  $region11: #{sac_critic_forward.1} parent=0 // pred_check_branch
    %21 = sbr.rel (0) target = $region13
  $region12: #{sac_critic_forward.1} parent=0 // pred_region
    _
  $region13: #{sac_critic_forward.1} parent=0 // pred_fallthru
    _
  // Predicated region
  $region14: #{sac_critic_forward.1} parent=0 // pred_check
    _
  $region15: #{sac_critic_forward.1} parent=0 // pred_check_branch
    %23 = sbr.rel (0) target = $region17
  $region16: #{sac_critic_forward.1} parent=0 // pred_region
    _
  $region17: #{sac_critic_forward.1} parent=0 // pred_fallthru
    _
  // Predicated region
  $region18: #{sac_critic_forward.1} parent=0 // pred_check
    _
  $region19: #{sac_critic_forward.1} parent=0 // pred_check_branch
    %25 = sbr.rel (0) target = $region21
  $region20: #{sac_critic_forward.1} parent=0 // pred_region
    _
  $region21: #{sac_critic_forward.1} parent=0 // pred_fallthru
    _
  // Predicated region
  $region22: #{sac_critic_forward.1} parent=0 // pred_check
    _
  $region23: #{sac_critic_forward.1} parent=0 // pred_check_branch
    %27 = sbr.rel (0) target = $region25
  $region24: #{sac_critic_forward.1} parent=0 // pred_region
    _
  $region25: #{sac_critic_forward.1} parent=0 // pred_fallthru
    _
  // Predicated region
  $region26: #{sac_critic_forward.1} parent=0 // pred_check
    _
  $region27: #{sac_critic_forward.1} parent=0 // pred_check_branch
    %29 = sbr.rel (0) target = $region29
  $region28: #{sac_critic_forward.1} parent=0 // pred_region
    _
  $region29: #{sac_critic_forward.1} parent=0 // pred_fallthru
    _
  // Predicated region
  $region30: #{sac_critic_forward.1} parent=0 // pred_check
    _
  $region31: #{sac_critic_forward.1} parent=0 // pred_check_branch
    %31 = sbr.rel (0) target = $region33
  $region32: #{sac_critic_forward.1} parent=0 // pred_region
    _
  $region33: #{sac_critic_forward.1} parent=0 // pred_fallthru
    _
  // Predicated region
  $region34: #{sac_critic_forward.1} parent=0 // pred_check
    _
  $region35: #{sac_critic_forward.1} parent=0 // pred_check_branch
    %33 = sbr.rel (0) target = $region37
  $region36: #{sac_critic_forward.1} parent=0 // pred_region
    _
  $region37: #{sac_critic_forward.1} parent=0 // pred_fallthru
    _
  // Predicated region
  $region38: #{sac_critic_forward.1} parent=0 // pred_check
    _
  $region39: #{sac_critic_forward.1} parent=0 // pred_check_branch
    %35 = sbr.rel (0) target = $region41
  $region40: #{sac_critic_forward.1} parent=0 // pred_region
    _
  $region41: #{sac_critic_forward.1} parent=0 // pred_fallthru
    _
  // Predicated region
  $region42: #{sac_critic_forward.1} parent=0 // pred_check
    _
  $region43: #{sac_critic_forward.1} parent=0 // pred_check_branch
    %37 = sbr.rel (0) target = $region45
  $region44: #{sac_critic_forward.1} parent=0 // pred_region
    _
  $region45: #{sac_critic_forward.1} parent=0 // pred_fallthru
    _
  %v39 = vld [vmem:[%s0] sm:$0xff]
  %v40 = vld [vmem:[%s0 + $0x8] sm:$0xff]
  %v41 = vld [vmem:[%s1] sm:$0xff]
  %v42 = vpack.c.bf16 %v40, %v39
  %v43 = vpack.c.bf16 %v41, %v41
  %v44 = vld [vmem:[%s2] sm:$0xf]
  %v45 = vld [vmem:[%s2 + $0x4] sm:$0xf]
  %v46 = vld [vmem:[%s2 + $0x8] sm:$0xf]
  %v47 = vld [vmem:[%s2 + $0xc] sm:$0xf]
  %v48 = vld [vmem:[%s2 + $0x10] sm:$0xf]
  %v49 = vld [vmem:[%s2 + $0x14] sm:$0xf]
  %v50 = vld [vmem:[%s2 + $0x18] sm:$0xf]
  %v51 = vld [vmem:[%s2 + $0x1c] sm:$0xf]
  %v52 = vld [vmem:[%s2 + $0x20] sm:$0xf]
  %v53 = vld [vmem:[%s2 + $0x24] sm:$0xf]
  %v54 = vld [vmem:[%s2 + $0x28] sm:$0xf]
  %v55 = vld [vmem:[%s2 + $0x2c] sm:$0xf]
  %v56 = vld [vmem:[%s2 + $0x30] sm:$0xf]
  %v57 = vld [vmem:[%s2 + $0x34] sm:$0xf]
  %v58 = vld [vmem:[%s2 + $0x38] sm:$0xf]
  %v59 = vld [vmem:[%s2 + $0x3c] sm:$0xf]
  %v60 = vld [vmem:[%s2 + $0x40] sm:$0xf]
  %v61 = vld [vmem:[%s2 + $0x44] sm:$0xf]
  %v62 = vld [vmem:[%s2 + $0x48] sm:$0xf]
  %v63 = vld [vmem:[%s2 + $0x4c] sm:$0xf]
  %v64 = vld [vmem:[%s2 + $0x50] sm:$0xf]
  %v65 = vld [vmem:[%s2 + $0x54] sm:$0xf]
  %v66 = vld [vmem:[%s2 + $0x58] sm:$0xf]
  %v67 = vld [vmem:[%s2 + $0x5c] sm:$0xf]
  %v68 = vld [vmem:[%s2 + $0x60] sm:$0xf]
  %v69 = vld [vmem:[%s2 + $0x64] sm:$0xf]
  %v70 = vld [vmem:[%s2 + $0x68] sm:$0xf]
  %v71 = vld [vmem:[%s2 + $0x6c] sm:$0xf]
  %v72 = vld [vmem:[%s2 + $0x70] sm:$0xf]
  %v73 = vld [vmem:[%s2 + $0x74] sm:$0xf]
  %v74 = vld [vmem:[%s2 + $0x78] sm:$0xf]
  %v75 = vld [vmem:[%s2 + $0x7c] sm:$0xf]
  %v76 = vld [vmem:[%s2 + $0x80] sm:$0xf]
  %v77 = vld [vmem:[%s2 + $0x84] sm:$0xf]
  %v78 = vld [vmem:[%s2 + $0x88] sm:$0xf]
  %v79 = vld [vmem:[%s2 + $0x8c] sm:$0xf]
  %v80 = vld [vmem:[%s2 + $0x90] sm:$0xf]
  %v81 = vld [vmem:[%s2 + $0x94] sm:$0xf]
  %v82 = vld [vmem:[%s2 + $0x98] sm:$0xf]
  %v83 = vld [vmem:[%s2 + $0x9c] sm:$0xf]
  %v84 = vld [vmem:[%s2 + $0xa0] sm:$0xf]
  %v85 = vld [vmem:[%s2 + $0xa4] sm:$0xf]
  %v86 = vld [vmem:[%s2 + $0xa8] sm:$0xf]
  %v87 = vld [vmem:[%s2 + $0xac] sm:$0xf]
  %v88 = vld [vmem:[%s2 + $0xb0] sm:$0xf]
  %v89 = vld [vmem:[%s2 + $0xb4] sm:$0xf]
  %v90 = vld [vmem:[%s2 + $0xb8] sm:$0xf]
  %v91 = vld [vmem:[%s2 + $0xbc] sm:$0xf]
  %v92 = vld [vmem:[%s2 + $0xc0] sm:$0xf]
  %v93 = vld [vmem:[%s2 + $0xc4] sm:$0xf]
  %v94 = vld [vmem:[%s2 + $0xc8] sm:$0xf]
  %v95 = vld [vmem:[%s2 + $0xcc] sm:$0xf]
  %v96 = vld [vmem:[%s2 + $0xd0] sm:$0xf]
  %v97 = vld [vmem:[%s2 + $0xd4] sm:$0xf]
  %v98 = vld [vmem:[%s2 + $0xd8] sm:$0xf]
  %v99 = vld [vmem:[%s2 + $0xdc] sm:$0xf]
  %v100 = vld [vmem:[%s2 + $0xe0] sm:$0xf]
  %v101 = vld [vmem:[%s2 + $0xe4] sm:$0xf]
  %v102 = vld [vmem:[%s2 + $0xe8] sm:$0xf]
  %v103 = vld [vmem:[%s2 + $0xec] sm:$0xf]
  %v104 = vld [vmem:[%s2 + $0xf0] sm:$0xf]
  %v105 = vld [vmem:[%s2 + $0xf4] sm:$0xf]
  %v106 = vld [vmem:[%s2 + $0xf8] sm:$0xf]
  %v107 = vld [vmem:[%s2 + $0xfc] sm:$0xf]
  %v108 = vld [vmem:[%s3] sm:$0xff]
  %v109 = vld [vmem:[%s3 + $0x8] sm:$0xff]
  %v110 = vld [vmem:[%s3 + $0x10] sm:$0xff]
  %v111 = vld [vmem:[%s3 + $0x18] sm:$0xff]
  %v112 = vld [vmem:[%s3 + $0x20] sm:$0xff]
  %v113 = vld [vmem:[%s3 + $0x28] sm:$0xff]
  %v114 = vld [vmem:[%s3 + $0x30] sm:$0xff]
  %v115 = vld [vmem:[%s3 + $0x38] sm:$0xff]
  %v116 = vld [vmem:[%s3 + $0x40] sm:$0xff]
  %v117 = vld [vmem:[%s3 + $0x48] sm:$0xff]
  %v118 = vld [vmem:[%s3 + $0x50] sm:$0xff]
  %v119 = vld [vmem:[%s3 + $0x58] sm:$0xff]
  %v120 = vld [vmem:[%s3 + $0x60] sm:$0xff]
  %v121 = vld [vmem:[%s3 + $0x68] sm:$0xff]
  %v122 = vld [vmem:[%s3 + $0x70] sm:$0xff]
  %v123 = vld [vmem:[%s3 + $0x78] sm:$0xff]
  %v124 = vld [vmem:[%s3 + $0x80] sm:$0xff]
  %v125 = vld [vmem:[%s3 + $0x88] sm:$0xff]
  %v126 = vld [vmem:[%s3 + $0x90] sm:$0xff]
  %v127 = vld [vmem:[%s3 + $0x98] sm:$0xff]
  %v128 = vld [vmem:[%s3 + $0xa0] sm:$0xff]
  %v129 = vld [vmem:[%s3 + $0xa8] sm:$0xff]
  %v130 = vld [vmem:[%s3 + $0xb0] sm:$0xff]
  %v131 = vld [vmem:[%s3 + $0xb8] sm:$0xff]
  %v132 = vld [vmem:[%s3 + $0xc0] sm:$0xff]
  %v133 = vld [vmem:[%s3 + $0xc8] sm:$0xff]
  %v134 = vld [vmem:[%s3 + $0xd0] sm:$0xff]
  %v135 = vld [vmem:[%s3 + $0xd8] sm:$0xff]
  %v136 = vld [vmem:[%s3 + $0xe0] sm:$0xff]
  %v137 = vld [vmem:[%s3 + $0xe8] sm:$0xff]
  %v138 = vld [vmem:[%s3 + $0xf0] sm:$0xff]
  %v139 = vld [vmem:[%s3 + $0xf8] sm:$0xff]
  %v140 = vld [vmem:[%s3 + $0x100] sm:$0xff]
  %v141 = vld [vmem:[%s3 + $0x108] sm:$0xff]
  %v142 = vld [vmem:[%s3 + $0x110] sm:$0xff]
  %v143 = vld [vmem:[%s3 + $0x118] sm:$0xff]
  %v144 = vld [vmem:[%s3 + $0x120] sm:$0xff]
  %v145 = vld [vmem:[%s3 + $0x128] sm:$0xff]
  %v146 = vld [vmem:[%s3 + $0x130] sm:$0xff]
  %v147 = vld [vmem:[%s3 + $0x138] sm:$0xff]
  %v148 = vld [vmem:[%s3 + $0x140] sm:$0xff]
  %v149 = vld [vmem:[%s3 + $0x148] sm:$0xff]
  %v150 = vld [vmem:[%s3 + $0x150] sm:$0xff]
  %v151 = vld [vmem:[%s3 + $0x158] sm:$0xff]
  %v152 = vld [vmem:[%s3 + $0x160] sm:$0xff]
  %v153 = vld [vmem:[%s3 + $0x168] sm:$0xff]
  %v154 = vld [vmem:[%s3 + $0x170] sm:$0xff]
  %v155 = vld [vmem:[%s3 + $0x178] sm:$0xff]
  %v156 = vld [vmem:[%s3 + $0x180] sm:$0xff]
  %v157 = vld [vmem:[%s3 + $0x188] sm:$0xff]
  %v158 = vld [vmem:[%s3 + $0x190] sm:$0xff]
  %v159 = vld [vmem:[%s3 + $0x198] sm:$0xff]
  %v160 = vld [vmem:[%s3 + $0x1a0] sm:$0xff]
  %v161 = vld [vmem:[%s3 + $0x1a8] sm:$0xff]
  %v162 = vld [vmem:[%s3 + $0x1b0] sm:$0xff]
  %v163 = vld [vmem:[%s3 + $0x1b8] sm:$0xff]
  %v164 = vld [vmem:[%s3 + $0x1c0] sm:$0xff]
  %v165 = vld [vmem:[%s3 + $0x1c8] sm:$0xff]
  %v166 = vld [vmem:[%s3 + $0x1d0] sm:$0xff]
  %v167 = vld [vmem:[%s3 + $0x1d8] sm:$0xff]
  %v168 = vld [vmem:[%s3 + $0x1e0] sm:$0xff]
  %v169 = vld [vmem:[%s3 + $0x1e8] sm:$0xff]
  %v170 = vld [vmem:[%s3 + $0x1f0] sm:$0xff]
  %v171 = vld [vmem:[%s3 + $0x1f8] sm:$0xff]
  %173 = vset.pattern.permute.xlu0 0
  %174 = vperm.xlu0 %173, %v108
  %v175 = vpop.permute.xlu0 %174
  %178 = vset.pattern.permute.xlu0 0
  %179 = vperm.xlu0 %178, %v109
  %v180 = vpop.permute.xlu0 %179
  %183 = vset.pattern.permute.xlu0 0
  %184 = vperm.xlu0 %183, %v110
  %v185 = vpop.permute.xlu0 %184
  %188 = vset.pattern.permute.xlu0 0
  %189 = vperm.xlu0 %188, %v111
  %v190 = vpop.permute.xlu0 %189
  %193 = vset.pattern.permute.xlu0 0
  %194 = vperm.xlu0 %193, %v112
  %v195 = vpop.permute.xlu0 %194
  %198 = vset.pattern.permute.xlu0 0
  %199 = vperm.xlu0 %198, %v113
  %v200 = vpop.permute.xlu0 %199
  %203 = vset.pattern.permute.xlu0 0
  %204 = vperm.xlu0 %203, %v114
  %v205 = vpop.permute.xlu0 %204
  %208 = vset.pattern.permute.xlu0 0
  %209 = vperm.xlu0 %208, %v115
  %v210 = vpop.permute.xlu0 %209
  %213 = vset.pattern.permute.xlu0 0
  %214 = vperm.xlu0 %213, %v116
  %v215 = vpop.permute.xlu0 %214
  %218 = vset.pattern.permute.xlu0 0
  %219 = vperm.xlu0 %218, %v117
  %v220 = vpop.permute.xlu0 %219
  %223 = vset.pattern.permute.xlu0 0
  %224 = vperm.xlu0 %223, %v118
  %v225 = vpop.permute.xlu0 %224
  %228 = vset.pattern.permute.xlu0 0
  %229 = vperm.xlu0 %228, %v119
  %v230 = vpop.permute.xlu0 %229
  %233 = vset.pattern.permute.xlu0 0
  %234 = vperm.xlu0 %233, %v120
  %v235 = vpop.permute.xlu0 %234
  %238 = vset.pattern.permute.xlu0 0
  %239 = vperm.xlu0 %238, %v121
  %v240 = vpop.permute.xlu0 %239
  %243 = vset.pattern.permute.xlu0 0
  %244 = vperm.xlu0 %243, %v122
  %v245 = vpop.permute.xlu0 %244
  %248 = vset.pattern.permute.xlu0 0
  %249 = vperm.xlu0 %248, %v123
  %v250 = vpop.permute.xlu0 %249
  %253 = vset.pattern.permute.xlu0 0
  %254 = vperm.xlu0 %253, %v124
  %v255 = vpop.permute.xlu0 %254
  %258 = vset.pattern.permute.xlu0 0
  %259 = vperm.xlu0 %258, %v125
  %v260 = vpop.permute.xlu0 %259
  %263 = vset.pattern.permute.xlu0 0
  %264 = vperm.xlu0 %263, %v126
  %v265 = vpop.permute.xlu0 %264
  %268 = vset.pattern.permute.xlu0 0
  %269 = vperm.xlu0 %268, %v127
  %v270 = vpop.permute.xlu0 %269
  %273 = vset.pattern.permute.xlu0 0
  %274 = vperm.xlu0 %273, %v128
  %v275 = vpop.permute.xlu0 %274
  %278 = vset.pattern.permute.xlu0 0
  %279 = vperm.xlu0 %278, %v129
  %v280 = vpop.permute.xlu0 %279
  %283 = vset.pattern.permute.xlu0 0
  %284 = vperm.xlu0 %283, %v130
  %v285 = vpop.permute.xlu0 %284
  %288 = vset.pattern.permute.xlu0 0
  %289 = vperm.xlu0 %288, %v131
  %v290 = vpop.permute.xlu0 %289
  %293 = vset.pattern.permute.xlu0 0
  %294 = vperm.xlu0 %293, %v132
  %v295 = vpop.permute.xlu0 %294
  %298 = vset.pattern.permute.xlu0 0
  %299 = vperm.xlu0 %298, %v133
  %v300 = vpop.permute.xlu0 %299
  %303 = vset.pattern.permute.xlu0 0
  %304 = vperm.xlu0 %303, %v134
  %v305 = vpop.permute.xlu0 %304
  %308 = vset.pattern.permute.xlu0 0
  %309 = vperm.xlu0 %308, %v135
  %v310 = vpop.permute.xlu0 %309
  %313 = vset.pattern.permute.xlu0 0
  %314 = vperm.xlu0 %313, %v136
  %v315 = vpop.permute.xlu0 %314
  %318 = vset.pattern.permute.xlu0 0
  %319 = vperm.xlu0 %318, %v137
  %v320 = vpop.permute.xlu0 %319
  %323 = vset.pattern.permute.xlu0 0
  %324 = vperm.xlu0 %323, %v138
  %v325 = vpop.permute.xlu0 %324
  %328 = vset.pattern.permute.xlu0 0
  %329 = vperm.xlu0 %328, %v139
  %v330 = vpop.permute.xlu0 %329
  %333 = vset.pattern.permute.xlu0 0
  %334 = vperm.xlu0 %333, %v140
  %v335 = vpop.permute.xlu0 %334
  %338 = vset.pattern.permute.xlu0 0
  %339 = vperm.xlu0 %338, %v141
  %v340 = vpop.permute.xlu0 %339
  %343 = vset.pattern.permute.xlu0 0
  %344 = vperm.xlu0 %343, %v142
  %v345 = vpop.permute.xlu0 %344
  %348 = vset.pattern.permute.xlu0 0
  %349 = vperm.xlu0 %348, %v143
  %v350 = vpop.permute.xlu0 %349
  %353 = vset.pattern.permute.xlu0 0
  %354 = vperm.xlu0 %353, %v144
  %v355 = vpop.permute.xlu0 %354
  %358 = vset.pattern.permute.xlu0 0
  %359 = vperm.xlu0 %358, %v145
  %v360 = vpop.permute.xlu0 %359
  %363 = vset.pattern.permute.xlu0 0
  %364 = vperm.xlu0 %363, %v146
  %v365 = vpop.permute.xlu0 %364
  %368 = vset.pattern.permute.xlu0 0
  %369 = vperm.xlu0 %368, %v147
  %v370 = vpop.permute.xlu0 %369
  %373 = vset.pattern.permute.xlu0 0
  %374 = vperm.xlu0 %373, %v148
  %v375 = vpop.permute.xlu0 %374
  %378 = vset.pattern.permute.xlu0 0
  %379 = vperm.xlu0 %378, %v149
  %v380 = vpop.permute.xlu0 %379
  %383 = vset.pattern.permute.xlu0 0
  %384 = vperm.xlu0 %383, %v150
  %v385 = vpop.permute.xlu0 %384
  %388 = vset.pattern.permute.xlu0 0
  %389 = vperm.xlu0 %388, %v151
  %v390 = vpop.permute.xlu0 %389
  %393 = vset.pattern.permute.xlu0 0
  %394 = vperm.xlu0 %393, %v152
  %v395 = vpop.permute.xlu0 %394
  %398 = vset.pattern.permute.xlu0 0
  %399 = vperm.xlu0 %398, %v153
  %v400 = vpop.permute.xlu0 %399
  %403 = vset.pattern.permute.xlu0 0
  %404 = vperm.xlu0 %403, %v154
  %v405 = vpop.permute.xlu0 %404
  %408 = vset.pattern.permute.xlu0 0
  %409 = vperm.xlu0 %408, %v155
  %v410 = vpop.permute.xlu0 %409
  %413 = vset.pattern.permute.xlu0 0
  %414 = vperm.xlu0 %413, %v156
  %v415 = vpop.permute.xlu0 %414
  %418 = vset.pattern.permute.xlu0 0
  %419 = vperm.xlu0 %418, %v157
  %v420 = vpop.permute.xlu0 %419
  %423 = vset.pattern.permute.xlu0 0
  %424 = vperm.xlu0 %423, %v158
  %v425 = vpop.permute.xlu0 %424
  %428 = vset.pattern.permute.xlu0 0
  %429 = vperm.xlu0 %428, %v159
  %v430 = vpop.permute.xlu0 %429
  %433 = vset.pattern.permute.xlu0 0
  %434 = vperm.xlu0 %433, %v160
  %v435 = vpop.permute.xlu0 %434
  %438 = vset.pattern.permute.xlu0 0
  %439 = vperm.xlu0 %438, %v161
  %v440 = vpop.permute.xlu0 %439
  %443 = vset.pattern.permute.xlu0 0
  %444 = vperm.xlu0 %443, %v162
  %v445 = vpop.permute.xlu0 %444
  %448 = vset.pattern.permute.xlu0 0
  %449 = vperm.xlu0 %448, %v163
  %v450 = vpop.permute.xlu0 %449
  %453 = vset.pattern.permute.xlu0 0
  %454 = vperm.xlu0 %453, %v164
  %v455 = vpop.permute.xlu0 %454
  %458 = vset.pattern.permute.xlu0 0
  %459 = vperm.xlu0 %458, %v165
  %v460 = vpop.permute.xlu0 %459
  %463 = vset.pattern.permute.xlu0 0
  %464 = vperm.xlu0 %463, %v166
  %v465 = vpop.permute.xlu0 %464
  %468 = vset.pattern.permute.xlu0 0
  %469 = vperm.xlu0 %468, %v167
  %v470 = vpop.permute.xlu0 %469
  %473 = vset.pattern.permute.xlu0 0
  %474 = vperm.xlu0 %473, %v168
  %v475 = vpop.permute.xlu0 %474
  %478 = vset.pattern.permute.xlu0 0
  %479 = vperm.xlu0 %478, %v169
  %v480 = vpop.permute.xlu0 %479
  %483 = vset.pattern.permute.xlu0 0
  %484 = vperm.xlu0 %483, %v170
  %v485 = vpop.permute.xlu0 %484
  %488 = vset.pattern.permute.xlu0 0
  %489 = vperm.xlu0 %488, %v171
  %v490 = vpop.permute.xlu0 %489
  %v556 = vunpack.c.l.b16 %v44
  %v557 = vunpack.c.l.b16 %v45
  %v558 = vunpack.c.l.b16 %v46
  %v559 = vunpack.c.l.b16 %v47
  %v560 = vunpack.c.l.b16 %v48
  %v561 = vunpack.c.l.b16 %v49
  %v562 = vunpack.c.l.b16 %v50
  %v563 = vunpack.c.l.b16 %v51
  %v564 = vunpack.c.l.b16 %v52
  %v565 = vunpack.c.l.b16 %v53
  %v566 = vunpack.c.l.b16 %v54
  %v567 = vunpack.c.l.b16 %v55
  %v568 = vunpack.c.l.b16 %v56
  %v569 = vunpack.c.l.b16 %v57
  %v570 = vunpack.c.l.b16 %v58
  %v571 = vunpack.c.l.b16 %v59
  %v572 = vunpack.c.l.b16 %v60
  %v573 = vunpack.c.l.b16 %v61
  %v574 = vunpack.c.l.b16 %v62
  %v575 = vunpack.c.l.b16 %v63
  %v576 = vunpack.c.l.b16 %v64
  %v577 = vunpack.c.l.b16 %v65
  %v578 = vunpack.c.l.b16 %v66
  %v579 = vunpack.c.l.b16 %v67
  %v580 = vunpack.c.l.b16 %v68
  %v581 = vunpack.c.l.b16 %v69
  %v582 = vunpack.c.l.b16 %v70
  %v583 = vunpack.c.l.b16 %v71
  %v584 = vunpack.c.l.b16 %v72
  %v585 = vunpack.c.l.b16 %v73
  %v586 = vunpack.c.l.b16 %v74
  %v587 = vunpack.c.l.b16 %v75
  %v588 = vunpack.c.l.b16 %v76
  %v589 = vunpack.c.l.b16 %v77
  %v590 = vunpack.c.l.b16 %v78
  %v591 = vunpack.c.l.b16 %v79
  %v592 = vunpack.c.l.b16 %v80
  %v593 = vunpack.c.l.b16 %v81
  %v594 = vunpack.c.l.b16 %v82
  %v595 = vunpack.c.l.b16 %v83
  %v596 = vunpack.c.l.b16 %v84
  %v597 = vunpack.c.l.b16 %v85
  %v598 = vunpack.c.l.b16 %v86
  %v599 = vunpack.c.l.b16 %v87
  %v600 = vunpack.c.l.b16 %v88
  %v601 = vunpack.c.l.b16 %v89
  %v602 = vunpack.c.l.b16 %v90
  %v603 = vunpack.c.l.b16 %v91
  %v604 = vunpack.c.l.b16 %v92
  %v605 = vunpack.c.l.b16 %v93
  %v606 = vunpack.c.l.b16 %v94
  %v607 = vunpack.c.l.b16 %v95
  %v608 = vunpack.c.l.b16 %v96
  %v609 = vunpack.c.l.b16 %v97
  %v610 = vunpack.c.l.b16 %v98
  %v611 = vunpack.c.l.b16 %v99
  %v612 = vunpack.c.l.b16 %v100
  %v613 = vunpack.c.l.b16 %v101
  %v614 = vunpack.c.l.b16 %v102
  %v615 = vunpack.c.l.b16 %v103
  %v616 = vunpack.c.l.b16 %v104
  %v617 = vunpack.c.l.b16 %v105
  %v618 = vunpack.c.l.b16 %v106
  %v619 = vunpack.c.l.b16 %v107
  %v620 = vpack.c.b16 %v557, %v556
  %v621 = vpack.c.b16 %v559, %v558
  %v622 = vpack.c.b16 %v561, %v560
  %v623 = vpack.c.b16 %v563, %v562
  %v624 = vpack.c.b16 %v565, %v564
  %v625 = vpack.c.b16 %v567, %v566
  %v626 = vpack.c.b16 %v569, %v568
  %v627 = vpack.c.b16 %v571, %v570
  %v628 = vpack.c.b16 %v573, %v572
  %v629 = vpack.c.b16 %v575, %v574
  %v630 = vpack.c.b16 %v577, %v576
  %v631 = vpack.c.b16 %v579, %v578
  %v632 = vpack.c.b16 %v581, %v580
  %v633 = vpack.c.b16 %v583, %v582
  %v634 = vpack.c.b16 %v585, %v584
  %v635 = vpack.c.b16 %v587, %v586
  %v636 = vpack.c.b16 %v589, %v588
  %v637 = vpack.c.b16 %v591, %v590
  %v638 = vpack.c.b16 %v593, %v592
  %v639 = vpack.c.b16 %v595, %v594
  %v640 = vpack.c.b16 %v597, %v596
  %v641 = vpack.c.b16 %v599, %v598
  %v642 = vpack.c.b16 %v601, %v600
  %v643 = vpack.c.b16 %v603, %v602
  %v644 = vpack.c.b16 %v605, %v604
  %v645 = vpack.c.b16 %v607, %v606
  %v646 = vpack.c.b16 %v609, %v608
  %v647 = vpack.c.b16 %v611, %v610
  %v648 = vpack.c.b16 %v613, %v612
  %v649 = vpack.c.b16 %v615, %v614
  %v650 = vpack.c.b16 %v617, %v616
  %v651 = vpack.c.b16 %v619, %v618
  %vm652 = vcmask 195584
  %v654 = vsel %vm652, %v620, 0
  %v657 = vsel %vm652, %v621, 0
  %v660 = vsel %vm652, %v622, 0
  %v663 = vsel %vm652, %v623, 0
  %v666 = vsel %vm652, %v624, 0
  %v669 = vsel %vm652, %v625, 0
  %v672 = vsel %vm652, %v626, 0
  %v675 = vsel %vm652, %v627, 0
  %v678 = vsel %vm652, %v628, 0
  %v681 = vsel %vm652, %v629, 0
  %v684 = vsel %vm652, %v630, 0
  %v687 = vsel %vm652, %v631, 0
  %v690 = vsel %vm652, %v632, 0
  %v693 = vsel %vm652, %v633, 0
  %v696 = vsel %vm652, %v634, 0
  %v699 = vsel %vm652, %v635, 0
  %v702 = vsel %vm652, %v636, 0
  %v705 = vsel %vm652, %v637, 0
  %v708 = vsel %vm652, %v638, 0
  %v711 = vsel %vm652, %v639, 0
  %v714 = vsel %vm652, %v640, 0
  %v717 = vsel %vm652, %v641, 0
  %v720 = vsel %vm652, %v642, 0
  %v723 = vsel %vm652, %v643, 0
  %v726 = vsel %vm652, %v644, 0
  %v729 = vsel %vm652, %v645, 0
  %v732 = vsel %vm652, %v646, 0
  %v735 = vsel %vm652, %v647, 0
  %v738 = vsel %vm652, %v648, 0
  %v741 = vsel %vm652, %v649, 0
  %v744 = vsel %vm652, %v650, 0
  %v747 = vsel %vm652, %v651, 0
  %vm749 = vcmask 1043456
  %v751 = vsel %vm749, %v43, 0
  %753 = vmatprep.subr.bf16.mxu0 0
  %754 = vmatpush1.bf16.msra.mxu0 %v42
  %755 = vmatprep.subr.bf16.mxu0 0
  %756 = vmatpush1.bf16.msra.mxu0 %v751
  %757 = vmatprep.subr.bf16.mxu0 0
  %758 = vmatpush1.bf16.msra.mxu0 0
  %759 = vmatprep.subr.bf16.mxu0 0
  %760 = vmatpush1.bf16.msra.mxu0 0
  %761 = vmatprep.subr.bf16.mxu0 0
  %762 = vmatpush1.bf16.msra.mxu0 0
  %763 = vmatprep.subr.bf16.mxu0 0
  %764 = vmatpush1.bf16.msra.mxu0 0
  %765 = vmatprep.subr.bf16.mxu0 0
  %766 = vmatpush1.bf16.msra.mxu0 0
  %767 = vmatprep.subr.bf16.mxu0 0
  %768 = vmatpush1.bf16.msra.mxu0 0
  %769 = vmatprep.subr.bf16.mxu0 0
  %770 = vmatpush1.bf16.msra.mxu0 0
  %771 = vmatprep.subr.bf16.mxu0 0
  %772 = vmatpush1.bf16.msra.mxu0 0
  %773 = vmatprep.subr.bf16.mxu0 0
  %774 = vmatpush1.bf16.msra.mxu0 0
  %775 = vmatprep.subr.bf16.mxu0 0
  %776 = vmatpush1.bf16.msra.mxu0 0
  %777 = vmatprep.subr.bf16.mxu0 0
  %778 = vmatpush1.bf16.msra.mxu0 0
  %779 = vmatprep.subr.bf16.mxu0 0
  %780 = vmatpush1.bf16.msra.mxu0 0
  %781 = vmatprep.subr.bf16.mxu0 0
  %782 = vmatpush1.bf16.msra.mxu0 0
  %783 = vmatprep.subr.bf16.mxu0 0
  %784 = vmatpush1.bf16.msra.mxu0 0
  %785 = vmatprep.mubr.bf16.mxu0 0
  %786 = vmatmul.mubr.bf16.gmra.mrb[0].mxu0 %v654
  %v787 = vpop.f32.mrb[0].mxu0
  %v788 = vadd.f32 %v175, %v787
  %v789 = vpop.f32.mrb[0].mxu0
  %v790 = vpop.f32.mrb[0].mxu0
  %v791 = vadd.f32 %v180, %v790
  %v792 = vpop.f32.mrb[0].mxu0
  %793 = vmatprep.mubr.bf16.mxu0 0
  %794 = vmatmul.mubr.bf16.gmra.mrb[0].mxu0 %v657
  %v795 = vpop.f32.mrb[0].mxu0
  %v796 = vadd.f32 %v185, %v795
  %v797 = vpop.f32.mrb[0].mxu0
  %v798 = vpop.f32.mrb[0].mxu0
  %v799 = vadd.f32 %v190, %v798
  %v800 = vpop.f32.mrb[0].mxu0
  %801 = vmatprep.mubr.bf16.mxu0 0
  %802 = vmatmul.mubr.bf16.gmra.mrb[0].mxu0 %v660
  %v803 = vpop.f32.mrb[0].mxu0
  %v804 = vadd.f32 %v195, %v803
  %v805 = vpop.f32.mrb[0].mxu0
  %v806 = vpop.f32.mrb[0].mxu0
  %v807 = vadd.f32 %v200, %v806
  %v808 = vpop.f32.mrb[0].mxu0
  %809 = vmatprep.mubr.bf16.mxu0 0
  %810 = vmatmul.mubr.bf16.gmra.mrb[0].mxu0 %v663
  %v811 = vpop.f32.mrb[0].mxu0
  %v812 = vadd.f32 %v205, %v811
  %v813 = vpop.f32.mrb[0].mxu0
  %v814 = vpop.f32.mrb[0].mxu0
  %v815 = vadd.f32 %v210, %v814
  %v816 = vpop.f32.mrb[0].mxu0
  %817 = vmatprep.mubr.bf16.mxu0 0
  %818 = vmatmul.mubr.bf16.gmra.mrb[0].mxu0 %v666
  %v819 = vpop.f32.mrb[0].mxu0
  %v820 = vadd.f32 %v215, %v819
  %v821 = vpop.f32.mrb[0].mxu0
  %v822 = vpop.f32.mrb[0].mxu0
  %v823 = vadd.f32 %v220, %v822
  %v824 = vpop.f32.mrb[0].mxu0
  %825 = vmatprep.mubr.bf16.mxu0 0
  %826 = vmatmul.mubr.bf16.gmra.mrb[0].mxu0 %v669
  %v827 = vpop.f32.mrb[0].mxu0
  %v828 = vadd.f32 %v225, %v827
  %v829 = vpop.f32.mrb[0].mxu0
  %v830 = vpop.f32.mrb[0].mxu0
  %v831 = vadd.f32 %v230, %v830
  %v832 = vpop.f32.mrb[0].mxu0
  %833 = vmatprep.mubr.bf16.mxu0 0
  %834 = vmatmul.mubr.bf16.gmra.mrb[0].mxu0 %v672
  %v835 = vpop.f32.mrb[0].mxu0
  %v836 = vadd.f32 %v235, %v835
  %v837 = vpop.f32.mrb[0].mxu0
  %v838 = vpop.f32.mrb[0].mxu0
  %v839 = vadd.f32 %v240, %v838
  %v840 = vpop.f32.mrb[0].mxu0
  %841 = vmatprep.mubr.bf16.mxu0 0
  %842 = vmatmul.mubr.bf16.gmra.mrb[0].mxu0 %v675
  %v843 = vpop.f32.mrb[0].mxu0
  %v844 = vadd.f32 %v245, %v843
  %v845 = vpop.f32.mrb[0].mxu0
  %v846 = vpop.f32.mrb[0].mxu0
  %v847 = vadd.f32 %v250, %v846
  %v848 = vpop.f32.mrb[0].mxu0
  %849 = vmatprep.mubr.bf16.mxu0 0
  %850 = vmatmul.mubr.bf16.gmra.mrb[0].mxu0 %v678
  %v851 = vpop.f32.mrb[0].mxu0
  %v852 = vadd.f32 %v255, %v851
  %v853 = vpop.f32.mrb[0].mxu0
  %v854 = vpop.f32.mrb[0].mxu0
  %v855 = vadd.f32 %v260, %v854
  %v856 = vpop.f32.mrb[0].mxu0
  %857 = vmatprep.mubr.bf16.mxu0 0
  %858 = vmatmul.mubr.bf16.gmra.mrb[0].mxu0 %v681
  %v859 = vpop.f32.mrb[0].mxu0
  %v860 = vadd.f32 %v265, %v859
  %v861 = vpop.f32.mrb[0].mxu0
  %v862 = vpop.f32.mrb[0].mxu0
  %v863 = vadd.f32 %v270, %v862
  %v864 = vpop.f32.mrb[0].mxu0
  %865 = vmatprep.mubr.bf16.mxu0 0
  %866 = vmatmul.mubr.bf16.gmra.mrb[0].mxu0 %v684
  %v867 = vpop.f32.mrb[0].mxu0
  %v868 = vadd.f32 %v275, %v867
  %v869 = vpop.f32.mrb[0].mxu0
  %v870 = vpop.f32.mrb[0].mxu0
  %v871 = vadd.f32 %v280, %v870
  %v872 = vpop.f32.mrb[0].mxu0
  %873 = vmatprep.mubr.bf16.mxu0 0
  %874 = vmatmul.mubr.bf16.gmra.mrb[0].mxu0 %v687
  %v875 = vpop.f32.mrb[0].mxu0
  %v876 = vadd.f32 %v285, %v875
  %v877 = vpop.f32.mrb[0].mxu0
  %v878 = vpop.f32.mrb[0].mxu0
  %v879 = vadd.f32 %v290, %v878
  %v880 = vpop.f32.mrb[0].mxu0
  %881 = vmatprep.mubr.bf16.mxu0 0
  %882 = vmatmul.mubr.bf16.gmra.mrb[0].mxu0 %v690
  %v883 = vpop.f32.mrb[0].mxu0
  %v884 = vadd.f32 %v295, %v883
  %v885 = vpop.f32.mrb[0].mxu0
  %v886 = vpop.f32.mrb[0].mxu0
  %v887 = vadd.f32 %v300, %v886
  %v888 = vpop.f32.mrb[0].mxu0
  %889 = vmatprep.mubr.bf16.mxu0 0
  %890 = vmatmul.mubr.bf16.gmra.mrb[0].mxu0 %v693
  %v891 = vpop.f32.mrb[0].mxu0
  %v892 = vadd.f32 %v305, %v891
  %v893 = vpop.f32.mrb[0].mxu0
  %v894 = vpop.f32.mrb[0].mxu0
  %v895 = vadd.f32 %v310, %v894
  %v896 = vpop.f32.mrb[0].mxu0
  %897 = vmatprep.mubr.bf16.mxu0 0
  %898 = vmatmul.mubr.bf16.gmra.mrb[0].mxu0 %v696
  %v899 = vpop.f32.mrb[0].mxu0
  %v900 = vadd.f32 %v315, %v899
  %v901 = vpop.f32.mrb[0].mxu0
  %v902 = vpop.f32.mrb[0].mxu0
  %v903 = vadd.f32 %v320, %v902
  %v904 = vpop.f32.mrb[0].mxu0
  %905 = vmatprep.mubr.bf16.mxu0 0
  %906 = vmatmul.mubr.bf16.gmra.mrb[0].mxu0 %v699
  %v907 = vpop.f32.mrb[0].mxu0
  %v908 = vadd.f32 %v325, %v907
  %v909 = vpop.f32.mrb[0].mxu0
  %v910 = vpop.f32.mrb[0].mxu0
  %v911 = vadd.f32 %v330, %v910
  %v912 = vpop.f32.mrb[0].mxu0
  %913 = vmatprep.mubr.bf16.mxu0 0
  %914 = vmatmul.mubr.bf16.gmra.mrb[0].mxu0 %v702
  %v915 = vpop.f32.mrb[0].mxu0
  %v916 = vadd.f32 %v335, %v915
  %v917 = vpop.f32.mrb[0].mxu0
  %v918 = vpop.f32.mrb[0].mxu0
  %v919 = vadd.f32 %v340, %v918
  %v920 = vpop.f32.mrb[0].mxu0
  %921 = vmatprep.mubr.bf16.mxu0 0
  %922 = vmatmul.mubr.bf16.gmra.mrb[0].mxu0 %v705
  %v923 = vpop.f32.mrb[0].mxu0
  %v924 = vadd.f32 %v345, %v923
  %v925 = vpop.f32.mrb[0].mxu0
  %v926 = vpop.f32.mrb[0].mxu0
  %v927 = vadd.f32 %v350, %v926
  %v928 = vpop.f32.mrb[0].mxu0
  %929 = vmatprep.mubr.bf16.mxu0 0
  %930 = vmatmul.mubr.bf16.gmra.mrb[0].mxu0 %v708
  %v931 = vpop.f32.mrb[0].mxu0
  %v932 = vadd.f32 %v355, %v931
  %v933 = vpop.f32.mrb[0].mxu0
  %v934 = vpop.f32.mrb[0].mxu0
  %v935 = vadd.f32 %v360, %v934
  %v936 = vpop.f32.mrb[0].mxu0
  %937 = vmatprep.mubr.bf16.mxu0 0
  %938 = vmatmul.mubr.bf16.gmra.mrb[0].mxu0 %v711
  %v939 = vpop.f32.mrb[0].mxu0
  %v940 = vadd.f32 %v365, %v939
  %v941 = vpop.f32.mrb[0].mxu0
  %v942 = vpop.f32.mrb[0].mxu0
  %v943 = vadd.f32 %v370, %v942
  %v944 = vpop.f32.mrb[0].mxu0
  %945 = vmatprep.mubr.bf16.mxu0 0
  %946 = vmatmul.mubr.bf16.gmra.mrb[0].mxu0 %v714
  %v947 = vpop.f32.mrb[0].mxu0
  %v948 = vadd.f32 %v375, %v947
  %v949 = vpop.f32.mrb[0].mxu0
  %v950 = vpop.f32.mrb[0].mxu0
  %v951 = vadd.f32 %v380, %v950
  %v952 = vpop.f32.mrb[0].mxu0
  %953 = vmatprep.mubr.bf16.mxu0 0
  %954 = vmatmul.mubr.bf16.gmra.mrb[0].mxu0 %v717
  %v955 = vpop.f32.mrb[0].mxu0
  %v956 = vadd.f32 %v385, %v955
  %v957 = vpop.f32.mrb[0].mxu0
  %v958 = vpop.f32.mrb[0].mxu0
  %v959 = vadd.f32 %v390, %v958
  %v960 = vpop.f32.mrb[0].mxu0
  %961 = vmatprep.mubr.bf16.mxu0 0
  %962 = vmatmul.mubr.bf16.gmra.mrb[0].mxu0 %v720
  %v963 = vpop.f32.mrb[0].mxu0
  %v964 = vadd.f32 %v395, %v963
  %v965 = vpop.f32.mrb[0].mxu0
  %v966 = vpop.f32.mrb[0].mxu0
  %v967 = vadd.f32 %v400, %v966
  %v968 = vpop.f32.mrb[0].mxu0
  %969 = vmatprep.mubr.bf16.mxu0 0
  %970 = vmatmul.mubr.bf16.gmra.mrb[0].mxu0 %v723
  %v971 = vpop.f32.mrb[0].mxu0
  %v972 = vadd.f32 %v405, %v971
  %v973 = vpop.f32.mrb[0].mxu0
  %v974 = vpop.f32.mrb[0].mxu0
  %v975 = vadd.f32 %v410, %v974
  %v976 = vpop.f32.mrb[0].mxu0
  %977 = vmatprep.mubr.bf16.mxu0 0
  %978 = vmatmul.mubr.bf16.gmra.mrb[0].mxu0 %v726
  %v979 = vpop.f32.mrb[0].mxu0
  %v980 = vadd.f32 %v415, %v979
  %v981 = vpop.f32.mrb[0].mxu0
  %v982 = vpop.f32.mrb[0].mxu0
  %v983 = vadd.f32 %v420, %v982
  %v984 = vpop.f32.mrb[0].mxu0
  %985 = vmatprep.mubr.bf16.mxu0 0
  %986 = vmatmul.mubr.bf16.gmra.mrb[0].mxu0 %v729
  %v987 = vpop.f32.mrb[0].mxu0
  %v988 = vadd.f32 %v425, %v987
  %v989 = vpop.f32.mrb[0].mxu0
  %v990 = vpop.f32.mrb[0].mxu0
  %v991 = vadd.f32 %v430, %v990
  %v992 = vpop.f32.mrb[0].mxu0
  %993 = vmatprep.mubr.bf16.mxu0 0
  %994 = vmatmul.mubr.bf16.gmra.mrb[0].mxu0 %v732
  %v995 = vpop.f32.mrb[0].mxu0
  %v996 = vadd.f32 %v435, %v995
  %v997 = vpop.f32.mrb[0].mxu0
  %v998 = vpop.f32.mrb[0].mxu0
  %v999 = vadd.f32 %v440, %v998
  %v1000 = vpop.f32.mrb[0].mxu0
  %1001 = vmatprep.mubr.bf16.mxu0 0
  %1002 = vmatmul.mubr.bf16.gmra.mrb[0].mxu0 %v735
  %v1003 = vpop.f32.mrb[0].mxu0
  %v1004 = vadd.f32 %v445, %v1003
  %v1005 = vpop.f32.mrb[0].mxu0
  %v1006 = vpop.f32.mrb[0].mxu0
  %v1007 = vadd.f32 %v450, %v1006
  %v1008 = vpop.f32.mrb[0].mxu0
  %1009 = vmatprep.mubr.bf16.mxu0 0
  %1010 = vmatmul.mubr.bf16.gmra.mrb[0].mxu0 %v738
  %v1011 = vpop.f32.mrb[0].mxu0
  %v1012 = vadd.f32 %v455, %v1011
  %v1013 = vpop.f32.mrb[0].mxu0
  %v1014 = vpop.f32.mrb[0].mxu0
  %v1015 = vadd.f32 %v460, %v1014
  %v1016 = vpop.f32.mrb[0].mxu0
  %1017 = vmatprep.mubr.bf16.mxu0 0
  %1018 = vmatmul.mubr.bf16.gmra.mrb[0].mxu0 %v741
  %v1019 = vpop.f32.mrb[0].mxu0
  %v1020 = vadd.f32 %v465, %v1019
  %v1021 = vpop.f32.mrb[0].mxu0
  %v1022 = vpop.f32.mrb[0].mxu0
  %v1023 = vadd.f32 %v470, %v1022
  %v1024 = vpop.f32.mrb[0].mxu0
  %1025 = vmatprep.mubr.bf16.mxu0 0
  %1026 = vmatmul.mubr.bf16.gmra.mrb[0].mxu0 %v744
  %v1027 = vpop.f32.mrb[0].mxu0
  %v1028 = vadd.f32 %v475, %v1027
  %v1029 = vpop.f32.mrb[0].mxu0
  %v1030 = vpop.f32.mrb[0].mxu0
  %v1031 = vadd.f32 %v480, %v1030
  %v1032 = vpop.f32.mrb[0].mxu0
  %1033 = vmatprep.mubr.bf16.mxu0 0
  %1034 = vmatmul.mubr.bf16.gmra.mrb[0].mxu0 %v747
  %v1035 = vpop.f32.mrb[0].mxu0
  %v1036 = vadd.f32 %v485, %v1035
  %v1037 = vpop.f32.mrb[0].mxu0
  %v1038 = vpop.f32.mrb[0].mxu0
  %v1039 = vadd.f32 %v490, %v1038
  %v1040 = vpop.f32.mrb[0].mxu0
  %1041 = vdwg.mxu0
  %v1042 = vmax.f32 %v788, 0.0
  %v1043 = vmax.f32 %v791, 0.0
  %v1044 = vmax.f32 %v796, 0.0
  %v1045 = vmax.f32 %v799, 0.0
  %v1046 = vmax.f32 %v804, 0.0
  %v1047 = vmax.f32 %v807, 0.0
  %v1048 = vmax.f32 %v812, 0.0
  %v1049 = vmax.f32 %v815, 0.0
  %v1050 = vmax.f32 %v820, 0.0
  %v1051 = vmax.f32 %v823, 0.0
  %v1052 = vmax.f32 %v828, 0.0
  %v1053 = vmax.f32 %v831, 0.0
  %v1054 = vmax.f32 %v836, 0.0
  %v1055 = vmax.f32 %v839, 0.0
  %v1056 = vmax.f32 %v844, 0.0
  %v1057 = vmax.f32 %v847, 0.0
  %v1058 = vmax.f32 %v852, 0.0
  %v1059 = vmax.f32 %v855, 0.0
  %v1060 = vmax.f32 %v860, 0.0
  %v1061 = vmax.f32 %v863, 0.0
  %v1062 = vmax.f32 %v868, 0.0
  %v1063 = vmax.f32 %v871, 0.0
  %v1064 = vmax.f32 %v876, 0.0
  %v1065 = vmax.f32 %v879, 0.0
  %v1066 = vmax.f32 %v884, 0.0
  %v1067 = vmax.f32 %v887, 0.0
  %v1068 = vmax.f32 %v892, 0.0
  %v1069 = vmax.f32 %v895, 0.0
  %v1070 = vmax.f32 %v900, 0.0
  %v1071 = vmax.f32 %v903, 0.0
  %v1072 = vmax.f32 %v908, 0.0
  %v1073 = vmax.f32 %v911, 0.0
  %v1074 = vmax.f32 %v916, 0.0
  %v1075 = vmax.f32 %v919, 0.0
  %v1076 = vmax.f32 %v924, 0.0
  %v1077 = vmax.f32 %v927, 0.0
  %v1078 = vmax.f32 %v932, 0.0
  %v1079 = vmax.f32 %v935, 0.0
  %v1080 = vmax.f32 %v940, 0.0
  %v1081 = vmax.f32 %v943, 0.0
  %v1082 = vmax.f32 %v948, 0.0
  %v1083 = vmax.f32 %v951, 0.0
  %v1084 = vmax.f32 %v956, 0.0
  %v1085 = vmax.f32 %v959, 0.0
  %v1086 = vmax.f32 %v964, 0.0
  %v1087 = vmax.f32 %v967, 0.0
  %v1088 = vmax.f32 %v972, 0.0
  %v1089 = vmax.f32 %v975, 0.0
  %v1090 = vmax.f32 %v980, 0.0
  %v1091 = vmax.f32 %v983, 0.0
  %v1092 = vmax.f32 %v988, 0.0
  %v1093 = vmax.f32 %v991, 0.0
  %v1094 = vmax.f32 %v996, 0.0
  %v1095 = vmax.f32 %v999, 0.0
  %v1096 = vmax.f32 %v1004, 0.0
  %v1097 = vmax.f32 %v1007, 0.0
  %v1098 = vmax.f32 %v1012, 0.0
  %v1099 = vmax.f32 %v1015, 0.0
  %v1100 = vmax.f32 %v1020, 0.0
  %v1101 = vmax.f32 %v1023, 0.0
  %v1102 = vmax.f32 %v1028, 0.0
  %v1103 = vmax.f32 %v1031, 0.0
  %v1104 = vmax.f32 %v1036, 0.0
  %v1105 = vmax.f32 %v1039, 0.0
  %v1106 = vpack.c.bf16 %v1043, %v1042
  %v1107 = vpack.c.bf16 %v1045, %v1044
  %v1108 = vpack.c.bf16 %v1047, %v1046
  %v1109 = vpack.c.bf16 %v1049, %v1048
  %v1110 = vpack.c.bf16 %v1051, %v1050
  %v1111 = vpack.c.bf16 %v1053, %v1052
  %v1112 = vpack.c.bf16 %v1055, %v1054
  %v1113 = vpack.c.bf16 %v1057, %v1056
  %v1114 = vpack.c.bf16 %v1059, %v1058
  %v1115 = vpack.c.bf16 %v1061, %v1060
  %v1116 = vpack.c.bf16 %v1063, %v1062
  %v1117 = vpack.c.bf16 %v1065, %v1064
  %v1118 = vpack.c.bf16 %v1067, %v1066
  %v1119 = vpack.c.bf16 %v1069, %v1068
  %v1120 = vpack.c.bf16 %v1071, %v1070
  %v1121 = vpack.c.bf16 %v1073, %v1072
  %v1122 = vpack.c.bf16 %v1075, %v1074
  %v1123 = vpack.c.bf16 %v1077, %v1076
  %v1124 = vpack.c.bf16 %v1079, %v1078
  %v1125 = vpack.c.bf16 %v1081, %v1080
  %v1126 = vpack.c.bf16 %v1083, %v1082
  %v1127 = vpack.c.bf16 %v1085, %v1084
  %v1128 = vpack.c.bf16 %v1087, %v1086
  %v1129 = vpack.c.bf16 %v1089, %v1088
  %v1130 = vpack.c.bf16 %v1091, %v1090
  %v1131 = vpack.c.bf16 %v1093, %v1092
  %v1132 = vpack.c.bf16 %v1095, %v1094
  %v1133 = vpack.c.bf16 %v1097, %v1096
  %v1134 = vpack.c.bf16 %v1099, %v1098
  %v1135 = vpack.c.bf16 %v1101, %v1100
  %v1136 = vpack.c.bf16 %v1103, %v1102
  %v1137 = vpack.c.bf16 %v1105, %v1104
  %v1138 = vld [vmem:[%s4] sm:$0xff]
  %v1139 = vld [vmem:[%s4 + $0x8] sm:$0xff]
  %v1140 = vld [vmem:[%s4 + $0x10] sm:$0xff]
  %v1141 = vld [vmem:[%s4 + $0x18] sm:$0xff]
  %v1142 = vld [vmem:[%s4 + $0x20] sm:$0xff]
  %v1143 = vld [vmem:[%s4 + $0x28] sm:$0xff]
  %v1144 = vld [vmem:[%s4 + $0x30] sm:$0xff]
  %v1145 = vld [vmem:[%s4 + $0x38] sm:$0xff]
  %v1146 = vld [vmem:[%s4 + $0x40] sm:$0xff]
  %v1147 = vld [vmem:[%s4 + $0x48] sm:$0xff]
  %v1148 = vld [vmem:[%s4 + $0x50] sm:$0xff]
  %v1149 = vld [vmem:[%s4 + $0x58] sm:$0xff]
  %v1150 = vld [vmem:[%s4 + $0x60] sm:$0xff]
  %v1151 = vld [vmem:[%s4 + $0x68] sm:$0xff]
  %v1152 = vld [vmem:[%s4 + $0x70] sm:$0xff]
  %v1153 = vld [vmem:[%s4 + $0x78] sm:$0xff]
  %v1154 = vld [vmem:[%s4 + $0x80] sm:$0xff]
  %v1155 = vld [vmem:[%s4 + $0x88] sm:$0xff]
  %v1156 = vld [vmem:[%s4 + $0x90] sm:$0xff]
  %v1157 = vld [vmem:[%s4 + $0x98] sm:$0xff]
  %v1158 = vld [vmem:[%s4 + $0xa0] sm:$0xff]
  %v1159 = vld [vmem:[%s4 + $0xa8] sm:$0xff]
  %v1160 = vld [vmem:[%s4 + $0xb0] sm:$0xff]
  %v1161 = vld [vmem:[%s4 + $0xb8] sm:$0xff]
  %v1162 = vld [vmem:[%s4 + $0xc0] sm:$0xff]
  %v1163 = vld [vmem:[%s4 + $0xc8] sm:$0xff]
  %v1164 = vld [vmem:[%s4 + $0xd0] sm:$0xff]
  %v1165 = vld [vmem:[%s4 + $0xd8] sm:$0xff]
  %v1166 = vld [vmem:[%s4 + $0xe0] sm:$0xff]
  %v1167 = vld [vmem:[%s4 + $0xe8] sm:$0xff]
  %v1168 = vld [vmem:[%s4 + $0xf0] sm:$0xff]
  %v1169 = vld [vmem:[%s4 + $0xf8] sm:$0xff]
  %v1170 = vld [vmem:[%s5] sm:$0xff]
  %v1171 = vld [vmem:[%s5 + $0x8] sm:$0xff]
  %v1172 = vld [vmem:[%s5 + $0x10] sm:$0xff]
  %v1173 = vld [vmem:[%s5 + $0x18] sm:$0xff]
  %v1174 = vld [vmem:[%s5 + $0x20] sm:$0xff]
  %v1175 = vld [vmem:[%s5 + $0x28] sm:$0xff]
  %v1176 = vld [vmem:[%s5 + $0x30] sm:$0xff]
  %v1177 = vld [vmem:[%s5 + $0x38] sm:$0xff]
  %v1178 = vld [vmem:[%s5 + $0x40] sm:$0xff]
  %v1179 = vld [vmem:[%s5 + $0x48] sm:$0xff]
  %v1180 = vld [vmem:[%s5 + $0x50] sm:$0xff]
  %v1181 = vld [vmem:[%s5 + $0x58] sm:$0xff]
  %v1182 = vld [vmem:[%s5 + $0x60] sm:$0xff]
  %v1183 = vld [vmem:[%s5 + $0x68] sm:$0xff]
  %v1184 = vld [vmem:[%s5 + $0x70] sm:$0xff]
  %v1185 = vld [vmem:[%s5 + $0x78] sm:$0xff]
  %v1186 = vld [vmem:[%s5 + $0x80] sm:$0xff]
  %v1187 = vld [vmem:[%s5 + $0x88] sm:$0xff]
  %v1188 = vld [vmem:[%s5 + $0x90] sm:$0xff]
  %v1189 = vld [vmem:[%s5 + $0x98] sm:$0xff]
  %v1190 = vld [vmem:[%s5 + $0xa0] sm:$0xff]
  %v1191 = vld [vmem:[%s5 + $0xa8] sm:$0xff]
  %v1192 = vld [vmem:[%s5 + $0xb0] sm:$0xff]
  %v1193 = vld [vmem:[%s5 + $0xb8] sm:$0xff]
  %v1194 = vld [vmem:[%s5 + $0xc0] sm:$0xff]
  %v1195 = vld [vmem:[%s5 + $0xc8] sm:$0xff]
  %v1196 = vld [vmem:[%s5 + $0xd0] sm:$0xff]
  %v1197 = vld [vmem:[%s5 + $0xd8] sm:$0xff]
  %v1198 = vld [vmem:[%s5 + $0xe0] sm:$0xff]
  %v1199 = vld [vmem:[%s5 + $0xe8] sm:$0xff]
  %v1200 = vld [vmem:[%s5 + $0xf0] sm:$0xff]
  %v1201 = vld [vmem:[%s5 + $0xf8] sm:$0xff]
  %1203 = vset.pattern.permute.xlu0 0
  %1204 = vperm.xlu0 %1203, %v1170
  %v1205 = vpop.permute.xlu0 %1204
  %1208 = vset.pattern.permute.xlu0 0
  %1209 = vperm.xlu0 %1208, %v1171
  %v1210 = vpop.permute.xlu0 %1209
  %1213 = vset.pattern.permute.xlu0 0
  %1214 = vperm.xlu0 %1213, %v1172
  %v1215 = vpop.permute.xlu0 %1214
  %1218 = vset.pattern.permute.xlu0 0
  %1219 = vperm.xlu0 %1218, %v1173
  %v1220 = vpop.permute.xlu0 %1219
  %1223 = vset.pattern.permute.xlu0 0
  %1224 = vperm.xlu0 %1223, %v1174
  %v1225 = vpop.permute.xlu0 %1224
  %1228 = vset.pattern.permute.xlu0 0
  %1229 = vperm.xlu0 %1228, %v1175
  %v1230 = vpop.permute.xlu0 %1229
  %1233 = vset.pattern.permute.xlu0 0
  %1234 = vperm.xlu0 %1233, %v1176
  %v1235 = vpop.permute.xlu0 %1234
  %1238 = vset.pattern.permute.xlu0 0
  %1239 = vperm.xlu0 %1238, %v1177
  %v1240 = vpop.permute.xlu0 %1239
  %1243 = vset.pattern.permute.xlu0 0
  %1244 = vperm.xlu0 %1243, %v1178
  %v1245 = vpop.permute.xlu0 %1244
  %1248 = vset.pattern.permute.xlu0 0
  %1249 = vperm.xlu0 %1248, %v1179
  %v1250 = vpop.permute.xlu0 %1249
  %1253 = vset.pattern.permute.xlu0 0
  %1254 = vperm.xlu0 %1253, %v1180
  %v1255 = vpop.permute.xlu0 %1254
  %1258 = vset.pattern.permute.xlu0 0
  %1259 = vperm.xlu0 %1258, %v1181
  %v1260 = vpop.permute.xlu0 %1259
  %1263 = vset.pattern.permute.xlu0 0
  %1264 = vperm.xlu0 %1263, %v1182
  %v1265 = vpop.permute.xlu0 %1264
  %1268 = vset.pattern.permute.xlu0 0
  %1269 = vperm.xlu0 %1268, %v1183
  %v1270 = vpop.permute.xlu0 %1269
  %1273 = vset.pattern.permute.xlu0 0
  %1274 = vperm.xlu0 %1273, %v1184
  %v1275 = vpop.permute.xlu0 %1274
  %1278 = vset.pattern.permute.xlu0 0
  %1279 = vperm.xlu0 %1278, %v1185
  %v1280 = vpop.permute.xlu0 %1279
  %1283 = vset.pattern.permute.xlu0 0
  %1284 = vperm.xlu0 %1283, %v1186
  %v1285 = vpop.permute.xlu0 %1284
  %1288 = vset.pattern.permute.xlu0 0
  %1289 = vperm.xlu0 %1288, %v1187
  %v1290 = vpop.permute.xlu0 %1289
  %1293 = vset.pattern.permute.xlu0 0
  %1294 = vperm.xlu0 %1293, %v1188
  %v1295 = vpop.permute.xlu0 %1294
  %1298 = vset.pattern.permute.xlu0 0
  %1299 = vperm.xlu0 %1298, %v1189
  %v1300 = vpop.permute.xlu0 %1299
  %1303 = vset.pattern.permute.xlu0 0
  %1304 = vperm.xlu0 %1303, %v1190
  %v1305 = vpop.permute.xlu0 %1304
  %1308 = vset.pattern.permute.xlu0 0
  %1309 = vperm.xlu0 %1308, %v1191
  %v1310 = vpop.permute.xlu0 %1309
  %1313 = vset.pattern.permute.xlu0 0
  %1314 = vperm.xlu0 %1313, %v1192
  %v1315 = vpop.permute.xlu0 %1314
  %1318 = vset.pattern.permute.xlu0 0
  %1319 = vperm.xlu0 %1318, %v1193
  %v1320 = vpop.permute.xlu0 %1319
  %1323 = vset.pattern.permute.xlu0 0
  %1324 = vperm.xlu0 %1323, %v1194
  %v1325 = vpop.permute.xlu0 %1324
  %1328 = vset.pattern.permute.xlu0 0
  %1329 = vperm.xlu0 %1328, %v1195
  %v1330 = vpop.permute.xlu0 %1329
  %1333 = vset.pattern.permute.xlu0 0
  %1334 = vperm.xlu0 %1333, %v1196
  %v1335 = vpop.permute.xlu0 %1334
  %1338 = vset.pattern.permute.xlu0 0
  %1339 = vperm.xlu0 %1338, %v1197
  %v1340 = vpop.permute.xlu0 %1339
  %1343 = vset.pattern.permute.xlu0 0
  %1344 = vperm.xlu0 %1343, %v1198
  %v1345 = vpop.permute.xlu0 %1344
  %1348 = vset.pattern.permute.xlu0 0
  %1349 = vperm.xlu0 %1348, %v1199
  %v1350 = vpop.permute.xlu0 %1349
  %1353 = vset.pattern.permute.xlu0 0
  %1354 = vperm.xlu0 %1353, %v1200
  %v1355 = vpop.permute.xlu0 %1354
  %1358 = vset.pattern.permute.xlu0 0
  %1359 = vperm.xlu0 %1358, %v1201
  %v1360 = vpop.permute.xlu0 %1359
  %v1394 = vunpack.c.l.b16 %v1138
  %v1395 = vunpack.c.h.b16 %v1138
  %v1396 = vunpack.c.l.b16 %v1139
  %v1397 = vunpack.c.h.b16 %v1139
  %v1398 = vunpack.c.l.b16 %v1140
  %v1399 = vunpack.c.h.b16 %v1140
  %v1400 = vunpack.c.l.b16 %v1141
  %v1401 = vunpack.c.h.b16 %v1141
  %v1402 = vunpack.c.l.b16 %v1142
  %v1403 = vunpack.c.h.b16 %v1142
  %v1404 = vunpack.c.l.b16 %v1143
  %v1405 = vunpack.c.h.b16 %v1143
  %v1406 = vunpack.c.l.b16 %v1144
  %v1407 = vunpack.c.h.b16 %v1144
  %v1408 = vunpack.c.l.b16 %v1145
  %v1409 = vunpack.c.h.b16 %v1145
  %v1410 = vunpack.c.l.b16 %v1146
  %v1411 = vunpack.c.h.b16 %v1146
  %v1412 = vunpack.c.l.b16 %v1147
  %v1413 = vunpack.c.h.b16 %v1147
  %v1414 = vunpack.c.l.b16 %v1148
  %v1415 = vunpack.c.h.b16 %v1148
  %v1416 = vunpack.c.l.b16 %v1149
  %v1417 = vunpack.c.h.b16 %v1149
  %v1418 = vunpack.c.l.b16 %v1150
  %v1419 = vunpack.c.h.b16 %v1150
  %v1420 = vunpack.c.l.b16 %v1151
  %v1421 = vunpack.c.h.b16 %v1151
  %v1422 = vunpack.c.l.b16 %v1152
  %v1423 = vunpack.c.h.b16 %v1152
  %v1424 = vunpack.c.l.b16 %v1153
  %v1425 = vunpack.c.h.b16 %v1153
  %v1426 = vunpack.c.l.b16 %v1154
  %v1427 = vunpack.c.h.b16 %v1154
  %v1428 = vunpack.c.l.b16 %v1155
  %v1429 = vunpack.c.h.b16 %v1155
  %v1430 = vunpack.c.l.b16 %v1156
  %v1431 = vunpack.c.h.b16 %v1156
  %v1432 = vunpack.c.l.b16 %v1157
  %v1433 = vunpack.c.h.b16 %v1157
  %v1434 = vunpack.c.l.b16 %v1158
  %v1435 = vunpack.c.h.b16 %v1158
  %v1436 = vunpack.c.l.b16 %v1159
  %v1437 = vunpack.c.h.b16 %v1159
  %v1438 = vunpack.c.l.b16 %v1160
  %v1439 = vunpack.c.h.b16 %v1160
  %v1440 = vunpack.c.l.b16 %v1161
  %v1441 = vunpack.c.h.b16 %v1161
  %v1442 = vunpack.c.l.b16 %v1162
  %v1443 = vunpack.c.h.b16 %v1162
  %v1444 = vunpack.c.l.b16 %v1163
  %v1445 = vunpack.c.h.b16 %v1163
  %v1446 = vunpack.c.l.b16 %v1164
  %v1447 = vunpack.c.h.b16 %v1164
  %v1448 = vunpack.c.l.b16 %v1165
  %v1449 = vunpack.c.h.b16 %v1165
  %v1450 = vunpack.c.l.b16 %v1166
  %v1451 = vunpack.c.h.b16 %v1166
  %v1452 = vunpack.c.l.b16 %v1167
  %v1453 = vunpack.c.h.b16 %v1167
  %v1454 = vunpack.c.l.b16 %v1168
  %v1455 = vunpack.c.h.b16 %v1168
  %v1456 = vunpack.c.l.b16 %v1169
  %v1457 = vunpack.c.h.b16 %v1169
  %v1458 = vpack.c.b16 %v1396, %v1394
  %v1459 = vpack.c.b16 %v1397, %v1395
  %v1460 = vpack.c.b16 %v1400, %v1398
  %v1461 = vpack.c.b16 %v1401, %v1399
  %v1462 = vpack.c.b16 %v1404, %v1402
  %v1463 = vpack.c.b16 %v1405, %v1403
  %v1464 = vpack.c.b16 %v1408, %v1406
  %v1465 = vpack.c.b16 %v1409, %v1407
  %v1466 = vpack.c.b16 %v1412, %v1410
  %v1467 = vpack.c.b16 %v1413, %v1411
  %v1468 = vpack.c.b16 %v1416, %v1414
  %v1469 = vpack.c.b16 %v1417, %v1415
  %v1470 = vpack.c.b16 %v1420, %v1418
  %v1471 = vpack.c.b16 %v1421, %v1419
  %v1472 = vpack.c.b16 %v1424, %v1422
  %v1473 = vpack.c.b16 %v1425, %v1423
  %v1474 = vpack.c.b16 %v1428, %v1426
  %v1475 = vpack.c.b16 %v1429, %v1427
  %v1476 = vpack.c.b16 %v1432, %v1430
  %v1477 = vpack.c.b16 %v1433, %v1431
  %v1478 = vpack.c.b16 %v1436, %v1434
  %v1479 = vpack.c.b16 %v1437, %v1435
  %v1480 = vpack.c.b16 %v1440, %v1438
  %v1481 = vpack.c.b16 %v1441, %v1439
  %v1482 = vpack.c.b16 %v1444, %v1442
  %v1483 = vpack.c.b16 %v1445, %v1443
  %v1484 = vpack.c.b16 %v1448, %v1446
  %v1485 = vpack.c.b16 %v1449, %v1447
  %v1486 = vpack.c.b16 %v1452, %v1450
  %v1487 = vpack.c.b16 %v1453, %v1451
  %v1488 = vpack.c.b16 %v1456, %v1454
  %v1489 = vpack.c.b16 %v1457, %v1455
  %1522 = vmatprep.subr.bf16.mxu0 0
  %1523 = vmatpush1.bf16.msra.mxu0 %v1106
  %1524 = vmatprep.subr.bf16.mxu0 0
  %1525 = vmatpush1.bf16.msra.mxu0 %v1107
  %1526 = vmatprep.subr.bf16.mxu0 0
  %1527 = vmatpush1.bf16.msra.mxu0 %v1108
  %1528 = vmatprep.subr.bf16.mxu0 0
  %1529 = vmatpush1.bf16.msra.mxu0 %v1109
  %1530 = vmatprep.subr.bf16.mxu0 0
  %1531 = vmatpush1.bf16.msra.mxu0 %v1110
  %1532 = vmatprep.subr.bf16.mxu0 0
  %1533 = vmatpush1.bf16.msra.mxu0 %v1111
  %1534 = vmatprep.subr.bf16.mxu0 0
  %1535 = vmatpush1.bf16.msra.mxu0 %v1112
  %1536 = vmatprep.subr.bf16.mxu0 0
  %1537 = vmatpush1.bf16.msra.mxu0 %v1113
  %1538 = vmatprep.subr.bf16.mxu0 0
  %1539 = vmatpush1.bf16.msra.mxu0 %v1114
  %1540 = vmatprep.subr.bf16.mxu0 0
  %1541 = vmatpush1.bf16.msra.mxu0 %v1115
  %1542 = vmatprep.subr.bf16.mxu0 0
  %1543 = vmatpush1.bf16.msra.mxu0 %v1116
  %1544 = vmatprep.subr.bf16.mxu0 0
  %1545 = vmatpush1.bf16.msra.mxu0 %v1117
  %1546 = vmatprep.subr.bf16.mxu0 0
  %1547 = vmatpush1.bf16.msra.mxu0 %v1118
  %1548 = vmatprep.subr.bf16.mxu0 0
  %1549 = vmatpush1.bf16.msra.mxu0 %v1119
  %1550 = vmatprep.subr.bf16.mxu0 0
  %1551 = vmatpush1.bf16.msra.mxu0 %v1120
  %1552 = vmatprep.subr.bf16.mxu0 0
  %1553 = vmatpush1.bf16.msra.mxu0 %v1121
  %1554 = vmatprep.mubr.bf16.mxu0 %v1459
  %1555 = vmatmul.mubr.bf16.gmra.mrb[0].mxu0 %v1458
  %v1556 = vpop.f32.mrb[0].mxu0
  %v1557 = vadd.f32 %v1205, %v1556
  %v1558 = vpop.f32.mrb[0].mxu0
  %v1559 = vpop.f32.mrb[0].mxu0
  %v1560 = vadd.f32 %v1210, %v1559
  %v1561 = vpop.f32.mrb[0].mxu0
  %1562 = vmatprep.mubr.bf16.mxu0 %v1461
  %1563 = vmatmul.mubr.bf16.gmra.mrb[0].mxu0 %v1460
  %v1564 = vpop.f32.mrb[0].mxu0
  %v1565 = vadd.f32 %v1215, %v1564
  %v1566 = vpop.f32.mrb[0].mxu0
  %v1567 = vpop.f32.mrb[0].mxu0
  %v1568 = vadd.f32 %v1220, %v1567
  %v1569 = vpop.f32.mrb[0].mxu0
  %1570 = vmatprep.mubr.bf16.mxu0 %v1463
  %1571 = vmatmul.mubr.bf16.gmra.mrb[0].mxu0 %v1462
  %v1572 = vpop.f32.mrb[0].mxu0
  %v1573 = vadd.f32 %v1225, %v1572
  %v1574 = vpop.f32.mrb[0].mxu0
  %v1575 = vpop.f32.mrb[0].mxu0
  %v1576 = vadd.f32 %v1230, %v1575
  %v1577 = vpop.f32.mrb[0].mxu0
  %1578 = vmatprep.mubr.bf16.mxu0 %v1465
  %1579 = vmatmul.mubr.bf16.gmra.mrb[0].mxu0 %v1464
  %v1580 = vpop.f32.mrb[0].mxu0
  %v1581 = vadd.f32 %v1235, %v1580
  %v1582 = vpop.f32.mrb[0].mxu0
  %v1583 = vpop.f32.mrb[0].mxu0
  %v1584 = vadd.f32 %v1240, %v1583
  %v1585 = vpop.f32.mrb[0].mxu0
  %1586 = vmatprep.mubr.bf16.mxu0 %v1467
  %1587 = vmatmul.mubr.bf16.gmra.mrb[0].mxu0 %v1466
  %v1588 = vpop.f32.mrb[0].mxu0
  %v1589 = vadd.f32 %v1245, %v1588
  %v1590 = vpop.f32.mrb[0].mxu0
  %v1591 = vpop.f32.mrb[0].mxu0
  %v1592 = vadd.f32 %v1250, %v1591
  %v1593 = vpop.f32.mrb[0].mxu0
  %1594 = vmatprep.mubr.bf16.mxu0 %v1469
  %1595 = vmatmul.mubr.bf16.gmra.mrb[0].mxu0 %v1468
  %v1596 = vpop.f32.mrb[0].mxu0
  %v1597 = vadd.f32 %v1255, %v1596
  %v1598 = vpop.f32.mrb[0].mxu0
  %v1599 = vpop.f32.mrb[0].mxu0
  %v1600 = vadd.f32 %v1260, %v1599
  %v1601 = vpop.f32.mrb[0].mxu0
  %1602 = vmatprep.mubr.bf16.mxu0 %v1471
  %1603 = vmatmul.mubr.bf16.gmra.mrb[0].mxu0 %v1470
  %v1604 = vpop.f32.mrb[0].mxu0
  %v1605 = vadd.f32 %v1265, %v1604
  %v1606 = vpop.f32.mrb[0].mxu0
  %v1607 = vpop.f32.mrb[0].mxu0
  %v1608 = vadd.f32 %v1270, %v1607
  %v1609 = vpop.f32.mrb[0].mxu0
  %1610 = vmatprep.mubr.bf16.mxu0 %v1473
  %1611 = vmatmul.mubr.bf16.gmra.mrb[0].mxu0 %v1472
  %v1612 = vpop.f32.mrb[0].mxu0
  %v1613 = vadd.f32 %v1275, %v1612
  %v1614 = vpop.f32.mrb[0].mxu0
  %v1615 = vpop.f32.mrb[0].mxu0
  %v1616 = vadd.f32 %v1280, %v1615
  %v1617 = vpop.f32.mrb[0].mxu0
  %1618 = vmatprep.mubr.bf16.mxu0 %v1475
  %1619 = vmatmul.mubr.bf16.gmra.mrb[0].mxu0 %v1474
  %v1620 = vpop.f32.mrb[0].mxu0
  %v1621 = vadd.f32 %v1285, %v1620
  %v1622 = vpop.f32.mrb[0].mxu0
  %v1623 = vpop.f32.mrb[0].mxu0
  %v1624 = vadd.f32 %v1290, %v1623
  %v1625 = vpop.f32.mrb[0].mxu0
  %1626 = vmatprep.mubr.bf16.mxu0 %v1477
  %1627 = vmatmul.mubr.bf16.gmra.mrb[0].mxu0 %v1476
  %v1628 = vpop.f32.mrb[0].mxu0
  %v1629 = vadd.f32 %v1295, %v1628
  %v1630 = vpop.f32.mrb[0].mxu0
  %v1631 = vpop.f32.mrb[0].mxu0
  %v1632 = vadd.f32 %v1300, %v1631
  %v1633 = vpop.f32.mrb[0].mxu0
  %1634 = vmatprep.mubr.bf16.mxu0 %v1479
  %1635 = vmatmul.mubr.bf16.gmra.mrb[0].mxu0 %v1478
  %v1636 = vpop.f32.mrb[0].mxu0
  %v1637 = vadd.f32 %v1305, %v1636
  %v1638 = vpop.f32.mrb[0].mxu0
  %v1639 = vpop.f32.mrb[0].mxu0
  %v1640 = vadd.f32 %v1310, %v1639
  %v1641 = vpop.f32.mrb[0].mxu0
  %1642 = vmatprep.mubr.bf16.mxu0 %v1481
  %1643 = vmatmul.mubr.bf16.gmra.mrb[0].mxu0 %v1480
  %v1644 = vpop.f32.mrb[0].mxu0
  %v1645 = vadd.f32 %v1315, %v1644
  %v1646 = vpop.f32.mrb[0].mxu0
  %v1647 = vpop.f32.mrb[0].mxu0
  %v1648 = vadd.f32 %v1320, %v1647
  %v1649 = vpop.f32.mrb[0].mxu0
  %1650 = vmatprep.mubr.bf16.mxu0 %v1483
  %1651 = vmatmul.mubr.bf16.gmra.mrb[0].mxu0 %v1482
  %v1652 = vpop.f32.mrb[0].mxu0
  %v1653 = vadd.f32 %v1325, %v1652
  %v1654 = vpop.f32.mrb[0].mxu0
  %v1655 = vpop.f32.mrb[0].mxu0
  %v1656 = vadd.f32 %v1330, %v1655
  %v1657 = vpop.f32.mrb[0].mxu0
  %1658 = vmatprep.mubr.bf16.mxu0 %v1485
  %1659 = vmatmul.mubr.bf16.gmra.mrb[0].mxu0 %v1484
  %v1660 = vpop.f32.mrb[0].mxu0
  %v1661 = vadd.f32 %v1335, %v1660
  %v1662 = vpop.f32.mrb[0].mxu0
  %v1663 = vpop.f32.mrb[0].mxu0
  %v1664 = vadd.f32 %v1340, %v1663
  %v1665 = vpop.f32.mrb[0].mxu0
  %1666 = vmatprep.mubr.bf16.mxu0 %v1487
  %1667 = vmatmul.mubr.bf16.gmra.mrb[0].mxu0 %v1486
  %v1668 = vpop.f32.mrb[0].mxu0
  %v1669 = vadd.f32 %v1345, %v1668
  %v1670 = vpop.f32.mrb[0].mxu0
  %v1671 = vpop.f32.mrb[0].mxu0
  %v1672 = vadd.f32 %v1350, %v1671
  %v1673 = vpop.f32.mrb[0].mxu0
  %1674 = vmatprep.mubr.bf16.mxu0 %v1489
  %1675 = vmatmul.mubr.bf16.gmra.mrb[0].mxu0 %v1488
  %v1676 = vpop.f32.mrb[0].mxu0
  %v1677 = vadd.f32 %v1355, %v1676
  %v1678 = vpop.f32.mrb[0].mxu0
  %v1679 = vpop.f32.mrb[0].mxu0
  %v1680 = vadd.f32 %v1360, %v1679
  %v1681 = vpop.f32.mrb[0].mxu0
  %1682 = vdwg.mxu0
  %v1683 = vmax.f32 %v1557, 0.0
  %v1684 = vmax.f32 %v1560, 0.0
  %v1685 = vmax.f32 %v1565, 0.0
  %v1686 = vmax.f32 %v1568, 0.0
  %v1687 = vmax.f32 %v1573, 0.0
  %v1688 = vmax.f32 %v1576, 0.0
  %v1689 = vmax.f32 %v1581, 0.0
  %v1690 = vmax.f32 %v1584, 0.0
  %v1691 = vmax.f32 %v1589, 0.0
  %v1692 = vmax.f32 %v1592, 0.0
  %v1693 = vmax.f32 %v1597, 0.0
  %v1694 = vmax.f32 %v1600, 0.0
  %v1695 = vmax.f32 %v1605, 0.0
  %v1696 = vmax.f32 %v1608, 0.0
  %v1697 = vmax.f32 %v1613, 0.0
  %v1698 = vmax.f32 %v1616, 0.0
  %v1699 = vmax.f32 %v1621, 0.0
  %v1700 = vmax.f32 %v1624, 0.0
  %v1701 = vmax.f32 %v1629, 0.0
  %v1702 = vmax.f32 %v1632, 0.0
  %v1703 = vmax.f32 %v1637, 0.0
  %v1704 = vmax.f32 %v1640, 0.0
  %v1705 = vmax.f32 %v1645, 0.0
  %v1706 = vmax.f32 %v1648, 0.0
  %v1707 = vmax.f32 %v1653, 0.0
  %v1708 = vmax.f32 %v1656, 0.0
  %v1709 = vmax.f32 %v1661, 0.0
  %v1710 = vmax.f32 %v1664, 0.0
  %v1711 = vmax.f32 %v1669, 0.0
  %v1712 = vmax.f32 %v1672, 0.0
  %v1713 = vmax.f32 %v1677, 0.0
  %v1714 = vmax.f32 %v1680, 0.0
  %v1715 = vpack.c.bf16 %v1684, %v1683
  %v1716 = vpack.c.bf16 %v1686, %v1685
  %v1717 = vpack.c.bf16 %v1688, %v1687
  %v1718 = vpack.c.bf16 %v1690, %v1689
  %v1719 = vpack.c.bf16 %v1692, %v1691
  %v1720 = vpack.c.bf16 %v1694, %v1693
  %v1721 = vpack.c.bf16 %v1696, %v1695
  %v1722 = vpack.c.bf16 %v1698, %v1697
  %v1723 = vpack.c.bf16 %v1700, %v1699
  %v1724 = vpack.c.bf16 %v1702, %v1701
  %v1725 = vpack.c.bf16 %v1704, %v1703
  %v1726 = vpack.c.bf16 %v1706, %v1705
  %v1727 = vpack.c.bf16 %v1708, %v1707
  %v1728 = vpack.c.bf16 %v1710, %v1709
  %v1729 = vpack.c.bf16 %v1712, %v1711
  %v1730 = vpack.c.bf16 %v1714, %v1713
  %v1731 = vld [vmem:[%s6] sm:$0xff]
  %v1732 = vld [vmem:[%s6 + $0x8] sm:$0xff]
  %v1733 = vld [vmem:[%s6 + $0x10] sm:$0xff]
  %v1734 = vld [vmem:[%s6 + $0x18] sm:$0xff]
  %v1735 = vld [vmem:[%s6 + $0x20] sm:$0xff]
  %v1736 = vld [vmem:[%s6 + $0x28] sm:$0xff]
  %v1737 = vld [vmem:[%s6 + $0x30] sm:$0xff]
  %v1738 = vld [vmem:[%s6 + $0x38] sm:$0xff]
  %v1739 = vld [vmem:[%s6 + $0x40] sm:$0xff]
  %v1740 = vld [vmem:[%s6 + $0x48] sm:$0xff]
  %v1741 = vld [vmem:[%s6 + $0x50] sm:$0xff]
  %v1742 = vld [vmem:[%s6 + $0x58] sm:$0xff]
  %v1743 = vld [vmem:[%s6 + $0x60] sm:$0xff]
  %v1744 = vld [vmem:[%s6 + $0x68] sm:$0xff]
  %v1745 = vld [vmem:[%s6 + $0x70] sm:$0xff]
  %v1746 = vld [vmem:[%s6 + $0x78] sm:$0xff]
  %v1747 = vld [vmem:[%s6 + $0x80] sm:$0xff]
  %v1748 = vld [vmem:[%s6 + $0x88] sm:$0xff]
  %v1749 = vld [vmem:[%s6 + $0x90] sm:$0xff]
  %v1750 = vld [vmem:[%s6 + $0x98] sm:$0xff]
  %v1751 = vld [vmem:[%s6 + $0xa0] sm:$0xff]
  %v1752 = vld [vmem:[%s6 + $0xa8] sm:$0xff]
  %v1753 = vld [vmem:[%s6 + $0xb0] sm:$0xff]
  %v1754 = vld [vmem:[%s6 + $0xb8] sm:$0xff]
  %v1755 = vld [vmem:[%s6 + $0xc0] sm:$0xff]
  %v1756 = vld [vmem:[%s6 + $0xc8] sm:$0xff]
  %v1757 = vld [vmem:[%s6 + $0xd0] sm:$0xff]
  %v1758 = vld [vmem:[%s6 + $0xd8] sm:$0xff]
  %v1759 = vld [vmem:[%s6 + $0xe0] sm:$0xff]
  %v1760 = vld [vmem:[%s6 + $0xe8] sm:$0xff]
  %v1761 = vld [vmem:[%s6 + $0xf0] sm:$0xff]
  %v1762 = vld [vmem:[%s6 + $0xf8] sm:$0xff]
  %v1763 = vld [vmem:[%s7] sm:$0xff]
  %v1764 = vld [vmem:[%s7 + $0x8] sm:$0xff]
  %v1765 = vld [vmem:[%s7 + $0x10] sm:$0xff]
  %v1766 = vld [vmem:[%s7 + $0x18] sm:$0xff]
  %v1767 = vld [vmem:[%s7 + $0x20] sm:$0xff]
  %v1768 = vld [vmem:[%s7 + $0x28] sm:$0xff]
  %v1769 = vld [vmem:[%s7 + $0x30] sm:$0xff]
  %v1770 = vld [vmem:[%s7 + $0x38] sm:$0xff]
  %v1771 = vld [vmem:[%s7 + $0x40] sm:$0xff]
  %v1772 = vld [vmem:[%s7 + $0x48] sm:$0xff]
  %v1773 = vld [vmem:[%s7 + $0x50] sm:$0xff]
  %v1774 = vld [vmem:[%s7 + $0x58] sm:$0xff]
  %v1775 = vld [vmem:[%s7 + $0x60] sm:$0xff]
  %v1776 = vld [vmem:[%s7 + $0x68] sm:$0xff]
  %v1777 = vld [vmem:[%s7 + $0x70] sm:$0xff]
  %v1778 = vld [vmem:[%s7 + $0x78] sm:$0xff]
  %v1779 = vld [vmem:[%s7 + $0x80] sm:$0xff]
  %v1780 = vld [vmem:[%s7 + $0x88] sm:$0xff]
  %v1781 = vld [vmem:[%s7 + $0x90] sm:$0xff]
  %v1782 = vld [vmem:[%s7 + $0x98] sm:$0xff]
  %v1783 = vld [vmem:[%s7 + $0xa0] sm:$0xff]
  %v1784 = vld [vmem:[%s7 + $0xa8] sm:$0xff]
  %v1785 = vld [vmem:[%s7 + $0xb0] sm:$0xff]
  %v1786 = vld [vmem:[%s7 + $0xb8] sm:$0xff]
  %v1787 = vld [vmem:[%s7 + $0xc0] sm:$0xff]
  %v1788 = vld [vmem:[%s7 + $0xc8] sm:$0xff]
  %v1789 = vld [vmem:[%s7 + $0xd0] sm:$0xff]
  %v1790 = vld [vmem:[%s7 + $0xd8] sm:$0xff]
  %v1791 = vld [vmem:[%s7 + $0xe0] sm:$0xff]
  %v1792 = vld [vmem:[%s7 + $0xe8] sm:$0xff]
  %v1793 = vld [vmem:[%s7 + $0xf0] sm:$0xff]
  %v1794 = vld [vmem:[%s7 + $0xf8] sm:$0xff]
  %1796 = vset.pattern.permute.xlu0 0
  %1797 = vperm.xlu0 %1796, %v1763
  %v1798 = vpop.permute.xlu0 %1797
  %1801 = vset.pattern.permute.xlu0 0
  %1802 = vperm.xlu0 %1801, %v1764
  %v1803 = vpop.permute.xlu0 %1802
  %1806 = vset.pattern.permute.xlu0 0
  %1807 = vperm.xlu0 %1806, %v1765
  %v1808 = vpop.permute.xlu0 %1807
  %1811 = vset.pattern.permute.xlu0 0
  %1812 = vperm.xlu0 %1811, %v1766
  %v1813 = vpop.permute.xlu0 %1812
  %1816 = vset.pattern.permute.xlu0 0
  %1817 = vperm.xlu0 %1816, %v1767
  %v1818 = vpop.permute.xlu0 %1817
  %1821 = vset.pattern.permute.xlu0 0
  %1822 = vperm.xlu0 %1821, %v1768
  %v1823 = vpop.permute.xlu0 %1822
  %1826 = vset.pattern.permute.xlu0 0
  %1827 = vperm.xlu0 %1826, %v1769
  %v1828 = vpop.permute.xlu0 %1827
  %1831 = vset.pattern.permute.xlu0 0
  %1832 = vperm.xlu0 %1831, %v1770
  %v1833 = vpop.permute.xlu0 %1832
  %1836 = vset.pattern.permute.xlu0 0
  %1837 = vperm.xlu0 %1836, %v1771
  %v1838 = vpop.permute.xlu0 %1837
  %1841 = vset.pattern.permute.xlu0 0
  %1842 = vperm.xlu0 %1841, %v1772
  %v1843 = vpop.permute.xlu0 %1842
  %1846 = vset.pattern.permute.xlu0 0
  %1847 = vperm.xlu0 %1846, %v1773
  %v1848 = vpop.permute.xlu0 %1847
  %1851 = vset.pattern.permute.xlu0 0
  %1852 = vperm.xlu0 %1851, %v1774
  %v1853 = vpop.permute.xlu0 %1852
  %1856 = vset.pattern.permute.xlu0 0
  %1857 = vperm.xlu0 %1856, %v1775
  %v1858 = vpop.permute.xlu0 %1857
  %1861 = vset.pattern.permute.xlu0 0
  %1862 = vperm.xlu0 %1861, %v1776
  %v1863 = vpop.permute.xlu0 %1862
  %1866 = vset.pattern.permute.xlu0 0
  %1867 = vperm.xlu0 %1866, %v1777
  %v1868 = vpop.permute.xlu0 %1867
  %1871 = vset.pattern.permute.xlu0 0
  %1872 = vperm.xlu0 %1871, %v1778
  %v1873 = vpop.permute.xlu0 %1872
  %1876 = vset.pattern.permute.xlu0 0
  %1877 = vperm.xlu0 %1876, %v1779
  %v1878 = vpop.permute.xlu0 %1877
  %1881 = vset.pattern.permute.xlu0 0
  %1882 = vperm.xlu0 %1881, %v1780
  %v1883 = vpop.permute.xlu0 %1882
  %1886 = vset.pattern.permute.xlu0 0
  %1887 = vperm.xlu0 %1886, %v1781
  %v1888 = vpop.permute.xlu0 %1887
  %1891 = vset.pattern.permute.xlu0 0
  %1892 = vperm.xlu0 %1891, %v1782
  %v1893 = vpop.permute.xlu0 %1892
  %1896 = vset.pattern.permute.xlu0 0
  %1897 = vperm.xlu0 %1896, %v1783
  %v1898 = vpop.permute.xlu0 %1897
  %1901 = vset.pattern.permute.xlu0 0
  %1902 = vperm.xlu0 %1901, %v1784
  %v1903 = vpop.permute.xlu0 %1902
  %1906 = vset.pattern.permute.xlu0 0
  %1907 = vperm.xlu0 %1906, %v1785
  %v1908 = vpop.permute.xlu0 %1907
  %1911 = vset.pattern.permute.xlu0 0
  %1912 = vperm.xlu0 %1911, %v1786
  %v1913 = vpop.permute.xlu0 %1912
  %1916 = vset.pattern.permute.xlu0 0
  %1917 = vperm.xlu0 %1916, %v1787
  %v1918 = vpop.permute.xlu0 %1917
  %1921 = vset.pattern.permute.xlu0 0
  %1922 = vperm.xlu0 %1921, %v1788
  %v1923 = vpop.permute.xlu0 %1922
  %1926 = vset.pattern.permute.xlu0 0
  %1927 = vperm.xlu0 %1926, %v1789
  %v1928 = vpop.permute.xlu0 %1927
  %1931 = vset.pattern.permute.xlu0 0
  %1932 = vperm.xlu0 %1931, %v1790
  %v1933 = vpop.permute.xlu0 %1932
  %1936 = vset.pattern.permute.xlu0 0
  %1937 = vperm.xlu0 %1936, %v1791
  %v1938 = vpop.permute.xlu0 %1937
  %1941 = vset.pattern.permute.xlu0 0
  %1942 = vperm.xlu0 %1941, %v1792
  %v1943 = vpop.permute.xlu0 %1942
  %1946 = vset.pattern.permute.xlu0 0
  %1947 = vperm.xlu0 %1946, %v1793
  %v1948 = vpop.permute.xlu0 %1947
  %1951 = vset.pattern.permute.xlu0 0
  %1952 = vperm.xlu0 %1951, %v1794
  %v1953 = vpop.permute.xlu0 %1952
  %v1987 = vunpack.c.l.b16 %v1731
  %v1988 = vunpack.c.h.b16 %v1731
  %v1989 = vunpack.c.l.b16 %v1732
  %v1990 = vunpack.c.h.b16 %v1732
  %v1991 = vunpack.c.l.b16 %v1733
  %v1992 = vunpack.c.h.b16 %v1733
  %v1993 = vunpack.c.l.b16 %v1734
  %v1994 = vunpack.c.h.b16 %v1734
  %v1995 = vunpack.c.l.b16 %v1735
  %v1996 = vunpack.c.h.b16 %v1735
  %v1997 = vunpack.c.l.b16 %v1736
  %v1998 = vunpack.c.h.b16 %v1736
  %v1999 = vunpack.c.l.b16 %v1737
  %v2000 = vunpack.c.h.b16 %v1737
  %v2001 = vunpack.c.l.b16 %v1738
  %v2002 = vunpack.c.h.b16 %v1738
  %v2003 = vunpack.c.l.b16 %v1739
  %v2004 = vunpack.c.h.b16 %v1739
  %v2005 = vunpack.c.l.b16 %v1740
  %v2006 = vunpack.c.h.b16 %v1740
  %v2007 = vunpack.c.l.b16 %v1741
  %v2008 = vunpack.c.h.b16 %v1741
  %v2009 = vunpack.c.l.b16 %v1742
  %v2010 = vunpack.c.h.b16 %v1742
  %v2011 = vunpack.c.l.b16 %v1743
  %v2012 = vunpack.c.h.b16 %v1743
  %v2013 = vunpack.c.l.b16 %v1744
  %v2014 = vunpack.c.h.b16 %v1744
  %v2015 = vunpack.c.l.b16 %v1745
  %v2016 = vunpack.c.h.b16 %v1745
  %v2017 = vunpack.c.l.b16 %v1746
  %v2018 = vunpack.c.h.b16 %v1746
  %v2019 = vunpack.c.l.b16 %v1747
  %v2020 = vunpack.c.h.b16 %v1747
  %v2021 = vunpack.c.l.b16 %v1748
  %v2022 = vunpack.c.h.b16 %v1748
  %v2023 = vunpack.c.l.b16 %v1749
  %v2024 = vunpack.c.h.b16 %v1749
  %v2025 = vunpack.c.l.b16 %v1750
  %v2026 = vunpack.c.h.b16 %v1750
  %v2027 = vunpack.c.l.b16 %v1751
  %v2028 = vunpack.c.h.b16 %v1751
  %v2029 = vunpack.c.l.b16 %v1752
  %v2030 = vunpack.c.h.b16 %v1752
  %v2031 = vunpack.c.l.b16 %v1753
  %v2032 = vunpack.c.h.b16 %v1753
  %v2033 = vunpack.c.l.b16 %v1754
  %v2034 = vunpack.c.h.b16 %v1754
  %v2035 = vunpack.c.l.b16 %v1755
  %v2036 = vunpack.c.h.b16 %v1755
  %v2037 = vunpack.c.l.b16 %v1756
  %v2038 = vunpack.c.h.b16 %v1756
  %v2039 = vunpack.c.l.b16 %v1757
  %v2040 = vunpack.c.h.b16 %v1757
  %v2041 = vunpack.c.l.b16 %v1758
  %v2042 = vunpack.c.h.b16 %v1758
  %v2043 = vunpack.c.l.b16 %v1759
  %v2044 = vunpack.c.h.b16 %v1759
  %v2045 = vunpack.c.l.b16 %v1760
  %v2046 = vunpack.c.h.b16 %v1760
  %v2047 = vunpack.c.l.b16 %v1761
  %v2048 = vunpack.c.h.b16 %v1761
  %v2049 = vunpack.c.l.b16 %v1762
  %v2050 = vunpack.c.h.b16 %v1762
  %v2051 = vpack.c.b16 %v1989, %v1987
  %v2052 = vpack.c.b16 %v1990, %v1988
  %v2053 = vpack.c.b16 %v1993, %v1991
  %v2054 = vpack.c.b16 %v1994, %v1992
  %v2055 = vpack.c.b16 %v1997, %v1995
  %v2056 = vpack.c.b16 %v1998, %v1996
  %v2057 = vpack.c.b16 %v2001, %v1999
  %v2058 = vpack.c.b16 %v2002, %v2000
  %v2059 = vpack.c.b16 %v2005, %v2003
  %v2060 = vpack.c.b16 %v2006, %v2004
  %v2061 = vpack.c.b16 %v2009, %v2007
  %v2062 = vpack.c.b16 %v2010, %v2008
  %v2063 = vpack.c.b16 %v2013, %v2011
  %v2064 = vpack.c.b16 %v2014, %v2012
  %v2065 = vpack.c.b16 %v2017, %v2015
  %v2066 = vpack.c.b16 %v2018, %v2016
  %v2067 = vpack.c.b16 %v2021, %v2019
  %v2068 = vpack.c.b16 %v2022, %v2020
  %v2069 = vpack.c.b16 %v2025, %v2023
  %v2070 = vpack.c.b16 %v2026, %v2024
  %v2071 = vpack.c.b16 %v2029, %v2027
  %v2072 = vpack.c.b16 %v2030, %v2028
  %v2073 = vpack.c.b16 %v2033, %v2031
  %v2074 = vpack.c.b16 %v2034, %v2032
  %v2075 = vpack.c.b16 %v2037, %v2035
  %v2076 = vpack.c.b16 %v2038, %v2036
  %v2077 = vpack.c.b16 %v2041, %v2039
  %v2078 = vpack.c.b16 %v2042, %v2040
  %v2079 = vpack.c.b16 %v2045, %v2043
  %v2080 = vpack.c.b16 %v2046, %v2044
  %v2081 = vpack.c.b16 %v2049, %v2047
  %v2082 = vpack.c.b16 %v2050, %v2048
  %2115 = vmatprep.subr.bf16.mxu0 0
  %2116 = vmatpush1.bf16.msra.mxu0 %v1122
  %2117 = vmatprep.subr.bf16.mxu0 0
  %2118 = vmatpush1.bf16.msra.mxu0 %v1123
  %2119 = vmatprep.subr.bf16.mxu0 0
  %2120 = vmatpush1.bf16.msra.mxu0 %v1124
  %2121 = vmatprep.subr.bf16.mxu0 0
  %2122 = vmatpush1.bf16.msra.mxu0 %v1125
  %2123 = vmatprep.subr.bf16.mxu0 0
  %2124 = vmatpush1.bf16.msra.mxu0 %v1126
  %2125 = vmatprep.subr.bf16.mxu0 0
  %2126 = vmatpush1.bf16.msra.mxu0 %v1127
  %2127 = vmatprep.subr.bf16.mxu0 0
  %2128 = vmatpush1.bf16.msra.mxu0 %v1128
  %2129 = vmatprep.subr.bf16.mxu0 0
  %2130 = vmatpush1.bf16.msra.mxu0 %v1129
  %2131 = vmatprep.subr.bf16.mxu0 0
  %2132 = vmatpush1.bf16.msra.mxu0 %v1130
  %2133 = vmatprep.subr.bf16.mxu0 0
  %2134 = vmatpush1.bf16.msra.mxu0 %v1131
  %2135 = vmatprep.subr.bf16.mxu0 0
  %2136 = vmatpush1.bf16.msra.mxu0 %v1132
  %2137 = vmatprep.subr.bf16.mxu0 0
  %2138 = vmatpush1.bf16.msra.mxu0 %v1133
  %2139 = vmatprep.subr.bf16.mxu0 0
  %2140 = vmatpush1.bf16.msra.mxu0 %v1134
  %2141 = vmatprep.subr.bf16.mxu0 0
  %2142 = vmatpush1.bf16.msra.mxu0 %v1135
  %2143 = vmatprep.subr.bf16.mxu0 0
  %2144 = vmatpush1.bf16.msra.mxu0 %v1136
  %2145 = vmatprep.subr.bf16.mxu0 0
  %2146 = vmatpush1.bf16.msra.mxu0 %v1137
  %2147 = vmatprep.mubr.bf16.mxu0 %v2052
  %2148 = vmatmul.mubr.bf16.gmra.mrb[0].mxu0 %v2051
  %v2149 = vpop.f32.mrb[0].mxu0
  %v2150 = vadd.f32 %v1798, %v2149
  %v2151 = vpop.f32.mrb[0].mxu0
  %v2152 = vpop.f32.mrb[0].mxu0
  %v2153 = vadd.f32 %v1803, %v2152
  %v2154 = vpop.f32.mrb[0].mxu0
  %2155 = vmatprep.mubr.bf16.mxu0 %v2054
  %2156 = vmatmul.mubr.bf16.gmra.mrb[0].mxu0 %v2053
  %v2157 = vpop.f32.mrb[0].mxu0
  %v2158 = vadd.f32 %v1808, %v2157
  %v2159 = vpop.f32.mrb[0].mxu0
  %v2160 = vpop.f32.mrb[0].mxu0
  %v2161 = vadd.f32 %v1813, %v2160
  %v2162 = vpop.f32.mrb[0].mxu0
  %2163 = vmatprep.mubr.bf16.mxu0 %v2056
  %2164 = vmatmul.mubr.bf16.gmra.mrb[0].mxu0 %v2055
  %v2165 = vpop.f32.mrb[0].mxu0
  %v2166 = vadd.f32 %v1818, %v2165
  %v2167 = vpop.f32.mrb[0].mxu0
  %v2168 = vpop.f32.mrb[0].mxu0
  %v2169 = vadd.f32 %v1823, %v2168
  %v2170 = vpop.f32.mrb[0].mxu0
  %2171 = vmatprep.mubr.bf16.mxu0 %v2058
  %2172 = vmatmul.mubr.bf16.gmra.mrb[0].mxu0 %v2057
  %v2173 = vpop.f32.mrb[0].mxu0
  %v2174 = vadd.f32 %v1828, %v2173
  %v2175 = vpop.f32.mrb[0].mxu0
  %v2176 = vpop.f32.mrb[0].mxu0
  %v2177 = vadd.f32 %v1833, %v2176
  %v2178 = vpop.f32.mrb[0].mxu0
  %2179 = vmatprep.mubr.bf16.mxu0 %v2060
  %2180 = vmatmul.mubr.bf16.gmra.mrb[0].mxu0 %v2059
  %v2181 = vpop.f32.mrb[0].mxu0
  %v2182 = vadd.f32 %v1838, %v2181
  %v2183 = vpop.f32.mrb[0].mxu0
  %v2184 = vpop.f32.mrb[0].mxu0
  %v2185 = vadd.f32 %v1843, %v2184
  %v2186 = vpop.f32.mrb[0].mxu0
  %2187 = vmatprep.mubr.bf16.mxu0 %v2062
  %2188 = vmatmul.mubr.bf16.gmra.mrb[0].mxu0 %v2061
  %v2189 = vpop.f32.mrb[0].mxu0
  %v2190 = vadd.f32 %v1848, %v2189
  %v2191 = vpop.f32.mrb[0].mxu0
  %v2192 = vpop.f32.mrb[0].mxu0
  %v2193 = vadd.f32 %v1853, %v2192
  %v2194 = vpop.f32.mrb[0].mxu0
  %2195 = vmatprep.mubr.bf16.mxu0 %v2064
  %2196 = vmatmul.mubr.bf16.gmra.mrb[0].mxu0 %v2063
  %v2197 = vpop.f32.mrb[0].mxu0
  %v2198 = vadd.f32 %v1858, %v2197
  %v2199 = vpop.f32.mrb[0].mxu0
  %v2200 = vpop.f32.mrb[0].mxu0
  %v2201 = vadd.f32 %v1863, %v2200
  %v2202 = vpop.f32.mrb[0].mxu0
  %2203 = vmatprep.mubr.bf16.mxu0 %v2066
  %2204 = vmatmul.mubr.bf16.gmra.mrb[0].mxu0 %v2065
  %v2205 = vpop.f32.mrb[0].mxu0
  %v2206 = vadd.f32 %v1868, %v2205
  %v2207 = vpop.f32.mrb[0].mxu0
  %v2208 = vpop.f32.mrb[0].mxu0
  %v2209 = vadd.f32 %v1873, %v2208
  %v2210 = vpop.f32.mrb[0].mxu0
  %2211 = vmatprep.mubr.bf16.mxu0 %v2068
  %2212 = vmatmul.mubr.bf16.gmra.mrb[0].mxu0 %v2067
  %v2213 = vpop.f32.mrb[0].mxu0
  %v2214 = vadd.f32 %v1878, %v2213
  %v2215 = vpop.f32.mrb[0].mxu0
  %v2216 = vpop.f32.mrb[0].mxu0
  %v2217 = vadd.f32 %v1883, %v2216
  %v2218 = vpop.f32.mrb[0].mxu0
  %2219 = vmatprep.mubr.bf16.mxu0 %v2070
  %2220 = vmatmul.mubr.bf16.gmra.mrb[0].mxu0 %v2069
  %v2221 = vpop.f32.mrb[0].mxu0
  %v2222 = vadd.f32 %v1888, %v2221
  %v2223 = vpop.f32.mrb[0].mxu0
  %v2224 = vpop.f32.mrb[0].mxu0
  %v2225 = vadd.f32 %v1893, %v2224
  %v2226 = vpop.f32.mrb[0].mxu0
  %2227 = vmatprep.mubr.bf16.mxu0 %v2072
  %2228 = vmatmul.mubr.bf16.gmra.mrb[0].mxu0 %v2071
  %v2229 = vpop.f32.mrb[0].mxu0
  %v2230 = vadd.f32 %v1898, %v2229
  %v2231 = vpop.f32.mrb[0].mxu0
  %v2232 = vpop.f32.mrb[0].mxu0
  %v2233 = vadd.f32 %v1903, %v2232
  %v2234 = vpop.f32.mrb[0].mxu0
  %2235 = vmatprep.mubr.bf16.mxu0 %v2074
  %2236 = vmatmul.mubr.bf16.gmra.mrb[0].mxu0 %v2073
  %v2237 = vpop.f32.mrb[0].mxu0
  %v2238 = vadd.f32 %v1908, %v2237
  %v2239 = vpop.f32.mrb[0].mxu0
  %v2240 = vpop.f32.mrb[0].mxu0
  %v2241 = vadd.f32 %v1913, %v2240
  %v2242 = vpop.f32.mrb[0].mxu0
  %2243 = vmatprep.mubr.bf16.mxu0 %v2076
  %2244 = vmatmul.mubr.bf16.gmra.mrb[0].mxu0 %v2075
  %v2245 = vpop.f32.mrb[0].mxu0
  %v2246 = vadd.f32 %v1918, %v2245
  %v2247 = vpop.f32.mrb[0].mxu0
  %v2248 = vpop.f32.mrb[0].mxu0
  %v2249 = vadd.f32 %v1923, %v2248
  %v2250 = vpop.f32.mrb[0].mxu0
  %2251 = vmatprep.mubr.bf16.mxu0 %v2078
  %2252 = vmatmul.mubr.bf16.gmra.mrb[0].mxu0 %v2077
  %v2253 = vpop.f32.mrb[0].mxu0
  %v2254 = vadd.f32 %v1928, %v2253
  %v2255 = vpop.f32.mrb[0].mxu0
  %v2256 = vpop.f32.mrb[0].mxu0
  %v2257 = vadd.f32 %v1933, %v2256
  %v2258 = vpop.f32.mrb[0].mxu0
  %2259 = vmatprep.mubr.bf16.mxu0 %v2080
  %2260 = vmatmul.mubr.bf16.gmra.mrb[0].mxu0 %v2079
  %v2261 = vpop.f32.mrb[0].mxu0
  %v2262 = vadd.f32 %v1938, %v2261
  %v2263 = vpop.f32.mrb[0].mxu0
  %v2264 = vpop.f32.mrb[0].mxu0
  %v2265 = vadd.f32 %v1943, %v2264
  %v2266 = vpop.f32.mrb[0].mxu0
  %2267 = vmatprep.mubr.bf16.mxu0 %v2082
  %2268 = vmatmul.mubr.bf16.gmra.mrb[0].mxu0 %v2081
  %v2269 = vpop.f32.mrb[0].mxu0
  %v2270 = vadd.f32 %v1948, %v2269
  %v2271 = vpop.f32.mrb[0].mxu0
  %v2272 = vpop.f32.mrb[0].mxu0
  %v2273 = vadd.f32 %v1953, %v2272
  %v2274 = vpop.f32.mrb[0].mxu0
  %2275 = vdwg.mxu0
  %v2276 = vmax.f32 %v2150, 0.0
  %v2277 = vmax.f32 %v2153, 0.0
  %v2278 = vmax.f32 %v2158, 0.0
  %v2279 = vmax.f32 %v2161, 0.0
  %v2280 = vmax.f32 %v2166, 0.0
  %v2281 = vmax.f32 %v2169, 0.0
  %v2282 = vmax.f32 %v2174, 0.0
  %v2283 = vmax.f32 %v2177, 0.0
  %v2284 = vmax.f32 %v2182, 0.0
  %v2285 = vmax.f32 %v2185, 0.0
  %v2286 = vmax.f32 %v2190, 0.0
  %v2287 = vmax.f32 %v2193, 0.0
  %v2288 = vmax.f32 %v2198, 0.0
  %v2289 = vmax.f32 %v2201, 0.0
  %v2290 = vmax.f32 %v2206, 0.0
  %v2291 = vmax.f32 %v2209, 0.0
  %v2292 = vmax.f32 %v2214, 0.0
  %v2293 = vmax.f32 %v2217, 0.0
  %v2294 = vmax.f32 %v2222, 0.0
  %v2295 = vmax.f32 %v2225, 0.0
  %v2296 = vmax.f32 %v2230, 0.0
  %v2297 = vmax.f32 %v2233, 0.0
  %v2298 = vmax.f32 %v2238, 0.0
  %v2299 = vmax.f32 %v2241, 0.0
  %v2300 = vmax.f32 %v2246, 0.0
  %v2301 = vmax.f32 %v2249, 0.0
  %v2302 = vmax.f32 %v2254, 0.0
  %v2303 = vmax.f32 %v2257, 0.0
  %v2304 = vmax.f32 %v2262, 0.0
  %v2305 = vmax.f32 %v2265, 0.0
  %v2306 = vmax.f32 %v2270, 0.0
  %v2307 = vmax.f32 %v2273, 0.0
  %v2308 = vpack.c.bf16 %v2277, %v2276
  %v2309 = vpack.c.bf16 %v2279, %v2278
  %v2310 = vpack.c.bf16 %v2281, %v2280
  %v2311 = vpack.c.bf16 %v2283, %v2282
  %v2312 = vpack.c.bf16 %v2285, %v2284
  %v2313 = vpack.c.bf16 %v2287, %v2286
  %v2314 = vpack.c.bf16 %v2289, %v2288
  %v2315 = vpack.c.bf16 %v2291, %v2290
  %v2316 = vpack.c.bf16 %v2293, %v2292
  %v2317 = vpack.c.bf16 %v2295, %v2294
  %v2318 = vpack.c.bf16 %v2297, %v2296
  %v2319 = vpack.c.bf16 %v2299, %v2298
  %v2320 = vpack.c.bf16 %v2301, %v2300
  %v2321 = vpack.c.bf16 %v2303, %v2302
  %v2322 = vpack.c.bf16 %v2305, %v2304
  %v2323 = vpack.c.bf16 %v2307, %v2306
  %v2324 = vld [vmem:[%s8] sm:$0x3]
  %v2325 = vld [vmem:[%s9] sm:$0x3]
  %v2328 = vunpack.c.l.s4 1966171168
  %v2329 = vunpack.c.0.s8 %v2328
  %v2330 = vlaneseq
  %v2331 = vshrl.u32 %v2330, 7
  %v2332 = vsub.s32 %v2329, %v2331
  %v2333 = vrot.slane %v2325, %v2332
  %v2334 = vcombine.high %v2333, %v2333
  %v2336 = vunpack.c.l.s4 1966171168
  %v2337 = vunpack.c.0.s8 %v2336
  %v2338 = vlaneseq
  %v2339 = vshrl.u32 %v2338, 7
  %v2340 = vsub.s32 %v2337, %v2339
  %v2341 = vrot.slane %v2333, %v2340
  %v2343 = vunpack.c.l.s4 1966171168
  %v2344 = vunpack.c.0.s8 %v2343
  %v2345 = vlaneseq
  %v2346 = vshrl.u32 %v2345, 7
  %v2347 = vsub.s32 %v2344, %v2346
  %v2348 = vrot.slane %v2334, %v2347
  %2351 = vmatprep.subr.bf16.mxu0 0
  %2352 = vmatpush1.bf16.msra.mxu0 %v2308
  %2353 = vmatprep.subr.bf16.mxu0 0
  %2354 = vmatpush1.bf16.msra.mxu0 %v2309
  %2355 = vmatprep.subr.bf16.mxu0 0
  %2356 = vmatpush1.bf16.msra.mxu0 %v2310
  %2357 = vmatprep.subr.bf16.mxu0 0
  %2358 = vmatpush1.bf16.msra.mxu0 %v2311
  %2359 = vmatprep.subr.bf16.mxu0 0
  %2360 = vmatpush1.bf16.msra.mxu0 %v2312
  %2361 = vmatprep.subr.bf16.mxu0 0
  %2362 = vmatpush1.bf16.msra.mxu0 %v2313
  %2363 = vmatprep.subr.bf16.mxu0 0
  %2364 = vmatpush1.bf16.msra.mxu0 %v2314
  %2365 = vmatprep.subr.bf16.mxu0 0
  %2366 = vmatpush1.bf16.msra.mxu0 %v2315
  %2367 = vmatprep.subr.bf16.mxu0 0
  %2368 = vmatpush1.bf16.msra.mxu0 %v2316
  %2369 = vmatprep.subr.bf16.mxu0 0
  %2370 = vmatpush1.bf16.msra.mxu0 %v2317
  %2371 = vmatprep.subr.bf16.mxu0 0
  %2372 = vmatpush1.bf16.msra.mxu0 %v2318
  %2373 = vmatprep.subr.bf16.mxu0 0
  %2374 = vmatpush1.bf16.msra.mxu0 %v2319
  %2375 = vmatprep.subr.bf16.mxu0 0
  %2376 = vmatpush1.bf16.msra.mxu0 %v2320
  %2377 = vmatprep.subr.bf16.mxu0 0
  %2378 = vmatpush1.bf16.msra.mxu0 %v2321
  %2379 = vmatprep.subr.bf16.mxu0 0
  %2380 = vmatpush1.bf16.msra.mxu0 %v2322
  %2381 = vmatprep.subr.bf16.mxu0 0
  %2382 = vmatpush1.bf16.msra.mxu0 %v2323
  %2383 = vmatprep.mubr.bf16.mxu0 %v2348
  %2384 = vmatmul.mubr.bf16.gmra.mrb[0].mxu0 %v2341
  %v2385 = vpop.f32.mrb[0].mxu0
  %v2386 = vadd.f32 0.0, %v2385
  %v2387 = vpop.f32.mrb[0].mxu0
  %v2388 = vpop.f32.mrb[0].mxu0
  %v2389 = vpop.f32.mrb[0].mxu0
  %2390 = vdwg.mxu0
  %v2393 = vunpack.c.l.s4 1966171168
  %v2394 = vunpack.c.0.s8 %v2393
  %v2395 = vlaneseq
  %v2396 = vshrl.u32 %v2395, 7
  %v2397 = vsub.s32 %v2394, %v2396
  %v2398 = vrot.slane %v2324, %v2397
  %v2399 = vcombine.high %v2398, %v2398
  %v2401 = vunpack.c.l.s4 1966171168
  %v2402 = vunpack.c.0.s8 %v2401
  %v2403 = vlaneseq
  %v2404 = vshrl.u32 %v2403, 7
  %v2405 = vsub.s32 %v2402, %v2404
  %v2406 = vrot.slane %v2398, %v2405
  %v2408 = vunpack.c.l.s4 1966171168
  %v2409 = vunpack.c.0.s8 %v2408
  %v2410 = vlaneseq
  %v2411 = vshrl.u32 %v2410, 7
  %v2412 = vsub.s32 %v2409, %v2411
  %v2413 = vrot.slane %v2399, %v2412
  %2416 = vmatprep.subr.bf16.mxu0 0
  %2417 = vmatpush1.bf16.msra.mxu0 %v1715
  %2418 = vmatprep.subr.bf16.mxu0 0
  %2419 = vmatpush1.bf16.msra.mxu0 %v1716
  %2420 = vmatprep.subr.bf16.mxu0 0
  %2421 = vmatpush1.bf16.msra.mxu0 %v1717
  %2422 = vmatprep.subr.bf16.mxu0 0
  %2423 = vmatpush1.bf16.msra.mxu0 %v1718
  %2424 = vmatprep.subr.bf16.mxu0 0
  %2425 = vmatpush1.bf16.msra.mxu0 %v1719
  %2426 = vmatprep.subr.bf16.mxu0 0
  %2427 = vmatpush1.bf16.msra.mxu0 %v1720
  %2428 = vmatprep.subr.bf16.mxu0 0
  %2429 = vmatpush1.bf16.msra.mxu0 %v1721
  %2430 = vmatprep.subr.bf16.mxu0 0
  %2431 = vmatpush1.bf16.msra.mxu0 %v1722
  %2432 = vmatprep.subr.bf16.mxu0 0
  %2433 = vmatpush1.bf16.msra.mxu0 %v1723
  %2434 = vmatprep.subr.bf16.mxu0 0
  %2435 = vmatpush1.bf16.msra.mxu0 %v1724
  %2436 = vmatprep.subr.bf16.mxu0 0
  %2437 = vmatpush1.bf16.msra.mxu0 %v1725
  %2438 = vmatprep.subr.bf16.mxu0 0
  %2439 = vmatpush1.bf16.msra.mxu0 %v1726
  %2440 = vmatprep.subr.bf16.mxu0 0
  %2441 = vmatpush1.bf16.msra.mxu0 %v1727
  %2442 = vmatprep.subr.bf16.mxu0 0
  %2443 = vmatpush1.bf16.msra.mxu0 %v1728
  %2444 = vmatprep.subr.bf16.mxu0 0
  %2445 = vmatpush1.bf16.msra.mxu0 %v1729
  %2446 = vmatprep.subr.bf16.mxu0 0
  %2447 = vmatpush1.bf16.msra.mxu0 %v1730
  %2448 = vmatprep.mubr.bf16.mxu0 %v2413
  %2449 = vmatmul.mubr.bf16.gmra.mrb[0].mxu0 %v2406
  %v2450 = vpop.f32.mrb[0].mxu0
  %v2451 = vadd.f32 %v2386, %v2450
  %v2452 = vpop.f32.mrb[0].mxu0
  %v2453 = vpop.f32.mrb[0].mxu0
  %v2454 = vpop.f32.mrb[0].mxu0
  %2455 = vdwg.mxu0
  %v2456 = vld [vmem:[%s10] sm:$0x3]
  %2458 = vset.pattern.permute.xlu0 0
  %2459 = vperm.xlu0 %2458, %v2456
  %v2460 = vpop.permute.xlu0 %2459
  %v2462 = vadd.f32 %v2451, %v2460
  %2463 = vst [vmem:[%s11] sm:$0x3] %v2462
  // Predicated region
  $region46: #{sac_critic_forward.1} parent=0 // pred_check
    _
  $region47: #{sac_critic_forward.1} parent=0 // pred_check_branch
    %2465 = sbr.rel (0) target = $region49
  $region48: #{sac_critic_forward.1} parent=0 // pred_region
    _
  $region49: #{sac_critic_forward.1} parent=0 // pred_fallthru
    _
  // Predicated region
  $region50: #{sac_critic_forward.1} parent=0 // pred_check
    _
  $region51: #{sac_critic_forward.1} parent=0 // pred_check_branch
    %2467 = sbr.rel (0) target = $region53
  $region52: #{sac_critic_forward.1} parent=0 // pred_region
    _
  $region53: #{sac_critic_forward.1} parent=0 // pred_fallthru
    _

</llo_original>
